<compile_context>
chip_gen: v6e
topology: v6e:2x2x1
jax: 0.10.0
libtpu: 0.0.40
codegen_flags: <defaults>
</compile_context>

<pallas_src>
import functools

import jax
import jax.numpy as jnp
from jax import lax
from jax.experimental import pallas as pl
from jax.experimental.pallas import tpu as pltpu

EPS = 1e-5          # BatchNorm eps (torch default in the module)
LANES = 128         # TPU lane width


def _round_up(n, m):
    return ((n + m - 1) // m) * m


def realnvp_fused_kernel(
    x_ref,
    sw0_ref, sb0_ref, sw1_ref, sb1_ref, sw2_ref, sb2_ref,
    tw0_ref, tb0_ref, tw1_ref, tb1_ref, tw2_ref, tb2_ref,
    log_gamma_ref, beta_ref,
    y_ref, ldj_ref,
    h_sc, ldj_sc,
):
    i = pl.program_id(0)
    n_blocks = pl.num_programs(0)

    # ---- init: load x into resident VMEM state at block 0 ----
    @pl.when(i == 0)
    def _():
        h_sc[...] = x_ref[...]
        ldj_sc[...] = jnp.zeros_like(ldj_sc)

    x = h_sc[...]                                  # (B, Dp)
    B, Dp = x.shape

    # ---- checkerboard mask generated in-kernel: mask_j = (j + block) % 2 ----
    col = lax.broadcasted_iota(jnp.int32, (1, Dp), 1)
    mask = ((col + i) % 2).astype(jnp.float32)     # (1, Dp)
    one_minus_mask = 1.0 - mask

    mx = x * mask

    # ---- s_net: Linear -> Tanh -> Linear -> Tanh -> Linear (n_hidden = 1) ----
    hs = jnp.tanh(
        jnp.dot(mx, sw0_ref[0], preferred_element_type=jnp.float32) + sb0_ref[0]
    )
    hs = jnp.tanh(
        jnp.dot(hs, sw1_ref[0], preferred_element_type=jnp.float32) + sb1_ref[0]
    )
    s = jnp.dot(hs, sw2_ref[0], preferred_element_type=jnp.float32) + sb2_ref[0]

    # ---- t_net: Linear -> ReLU -> Linear -> ReLU -> Linear ----
    ht = jnp.maximum(
        jnp.dot(mx, tw0_ref[0], preferred_element_type=jnp.float32) + tb0_ref[0],
        0.0,
    )
    ht = jnp.maximum(
        jnp.dot(ht, tw1_ref[0], preferred_element_type=jnp.float32) + tb1_ref[0],
        0.0,
    )
    t = jnp.dot(ht, tw2_ref[0], preferred_element_type=jnp.float32) + tb2_ref[0]

    # ---- coupling transform ----
    u = mx + one_minus_mask * (x - t) * jnp.exp(-s)
    ldj_coupling = -(one_minus_mask * s)           # (B, Dp)

    # ---- BatchNorm (training: batch mean, torch x.var(0) = unbiased /(B-1)) ----
    inv_bm1 = 1.0 / float(B - 1)                   # compile-time constant
    mean = jnp.mean(u, axis=0, keepdims=True)      # (1, Dp)
    diff = u - mean
    var = jnp.sum(diff * diff, axis=0, keepdims=True) * inv_bm1
    inv_std = lax.rsqrt(var + EPS)
    x_hat = diff * inv_std
    log_gamma = log_gamma_ref[0]                   # (1, Dp)
    y = jnp.exp(log_gamma) * x_hat + beta_ref[0]
    ldj_bn = log_gamma + jnp.log(inv_std)          # == log_gamma - 0.5*log(var+eps)

    # ---- carry state to next block ----
    h_sc[...] = y
    ldj_sc[...] = ldj_sc[...] + ldj_coupling + ldj_bn

    # ---- finalize: write outputs once, lane-dense ----
    @pl.when(i == n_blocks - 1)
    def _():
        y_ref[...] = h_sc[...]
        ldj_ref[...] = ldj_sc[...]


_PARAM_ORDER = (
    "sw0", "sb0", "sw1", "sb1", "sw2", "sb2",
    "tw0", "tb0", "tw1", "tb1", "tw2", "tb2",
    "log_gamma", "beta",
)


def make_realnvp_params(key, n_blocks, input_size, hidden_size):
    """Deterministic synthetic parameters (n_hidden fixed to 1), unpadded shapes."""
    D, H = input_size, hidden_size
    params = []
    for _ in range(n_blocks):
        keys = jax.random.split(key, 13)
        key = keys[0]

        def w(k, shape, scale=0.1):
            return (scale * jax.random.normal(k, shape)).astype(jnp.float32)

        blk = dict(
            # s_net (weights stored (in, out) so h = x @ W + b)
            sw0=w(keys[1], (D, H)), sb0=w(keys[2], (1, H), 0.01),
            sw1=w(keys[3], (H, H)), sb1=w(keys[4], (1, H), 0.01),
            sw2=w(keys[5], (H, D)), sb2=w(keys[6], (1, D), 0.01),
            # t_net
            tw0=w(keys[7], (D, H)), tb0=w(keys[8], (1, H), 0.01),
            tw1=w(keys[9], (H, H)), tb1=w(keys[10], (1, H), 0.01),
            tw2=w(keys[11], (H, D)), tb2=w(keys[12], (1, D), 0.01),
            # BatchNorm params (zeros, per the module's __init__)
            log_gamma=jnp.zeros((1, D), jnp.float32),
            beta=jnp.zeros((1, D), jnp.float32),
        )
        params.append(blk)
    return params


def _pad_to(a, tgt_shape):
    pads = [(0, t - s) for s, t in zip(a.shape, tgt_shape)]
    return jnp.pad(a, pads)


@functools.partial(jax.jit, static_argnames=("n_blocks",))
def realnvp_forward(x, params, n_blocks):
    """RealNVP.forward(x): returns (u, sum_log_abs_det_jacobians), both (B, D)."""
    B, D = x.shape
    H = params[0]["sw0"].shape[1]
    Dp = _round_up(D, LANES)
    Hp = _round_up(H, LANES)

    pad_shapes = dict(
        sw0=(Dp, Hp), sb0=(1, Hp), sw1=(Hp, Hp), sb1=(1, Hp), sw2=(Hp, Dp), sb2=(1, Dp),
        tw0=(Dp, Hp), tb0=(1, Hp), tw1=(Hp, Hp), tb1=(1, Hp), tw2=(Hp, Dp), tb2=(1, Dp),
        log_gamma=(1, Dp), beta=(1, Dp),
    )

    # Stack per-block params along a leading axis: (n_blocks, *padded_shape).
    stacked = {
        name: jnp.stack([_pad_to(p[name], pad_shapes[name]) for p in params], axis=0)
        for name in _PARAM_ORDER
    }
    x_pad = _pad_to(x.astype(jnp.float32), (B, Dp))

    io_spec = pl.BlockSpec((B, Dp), lambda i: (0, 0))     # resident across blocks
    param_specs = [
        pl.BlockSpec((1,) + pad_shapes[name], lambda i: (i, 0, 0))
        for name in _PARAM_ORDER
    ]

    y_pad, ldj_pad = pl.pallas_call(
        realnvp_fused_kernel,
        out_shape=(
            jax.ShapeDtypeStruct((B, Dp), jnp.float32),
            jax.ShapeDtypeStruct((B, Dp), jnp.float32),
        ),
        grid_spec=pltpu.PrefetchScalarGridSpec(
            num_scalar_prefetch=0,
            grid=(n_blocks,),
            in_specs=[io_spec] + param_specs,
            out_specs=(io_spec, io_spec),
            scratch_shapes=[
                pltpu.VMEM((B, Dp), jnp.float32),   # h (flow state)
                pltpu.VMEM((B, Dp), jnp.float32),   # running log|det J|
            ],
        ),
        compiler_params=pltpu.CompilerParams(
            dimension_semantics=("arbitrary",),     # blocks are sequentially dependent
        ),
    )(x_pad, *[stacked[name] for name in _PARAM_ORDER])

    return y_pad[:, :D], ldj_pad[:, :D]


def realnvp_forward_ref(x, params, n_blocks):
    """Pure-JAX reference of the same math (matches the torch module in training mode)."""
    B, D = x.shape
    mask0 = (jnp.arange(D, dtype=jnp.float32) % 2.0).reshape(1, D)
    ldj = jnp.zeros((B, D), jnp.float32)
    h = x
    for i in range(n_blocks):
        mask = mask0 if (i % 2 == 0) else (1.0 - mask0)
        p = params[i]
        mx = h * mask
        hs = jnp.tanh(mx @ p["sw0"] + p["sb0"])
        hs = jnp.tanh(hs @ p["sw1"] + p["sb1"])
        s = hs @ p["sw2"] + p["sb2"]
        ht = jnp.maximum(mx @ p["tw0"] + p["tb0"], 0.0)
        ht = jnp.maximum(ht @ p["tw1"] + p["tb1"], 0.0)
        t = ht @ p["tw2"] + p["tb2"]
        u = mx + (1.0 - mask) * (h - t) * jnp.exp(-s)
        ldj = ldj - (1.0 - mask) * s
        mean = jnp.mean(u, axis=0, keepdims=True)
        var = jnp.sum((u - mean) ** 2, axis=0, keepdims=True) / (B - 1)  # torch x.var(0)
        x_hat = (u - mean) / jnp.sqrt(var + EPS)
        h = jnp.exp(p["log_gamma"]) * x_hat + p["beta"]
        ldj = ldj + p["log_gamma"] - 0.5 * jnp.log(var + EPS)
    return h, ldj


if __name__ == "__main__":
    # RealNVP(n_blocks=2, input_size=8, hidden_size=32, n_hidden=1, batch_norm=True)
    n_blocks, input_size, hidden_size = 2, 8, 32
    batch = 8  # note: BatchNorm's unbiased variance needs batch >= 2

    key = jax.random.PRNGKey(0)
    kx, kp = jax.random.split(key)
    x = jax.random.normal(kx, (batch, input_size), dtype=jnp.float32)
    params = make_realnvp_params(kp, n_blocks, input_size, hidden_size)

    u, sum_ldj = realnvp_forward(x, params, n_blocks)
    u = jax.block_until_ready(u)
    sum_ldj = jax.block_until_ready(sum_ldj)

    u_ref, ldj_ref = realnvp_forward_ref(x, params, n_blocks)
    assert jnp.allclose(u, u_ref, atol=1e-4, rtol=1e-4), "u mismatch vs reference"
    assert jnp.allclose(sum_ldj, ldj_ref, atol=1e-4, rtol=1e-4), "ldj mismatch vs reference"

    print("KERNEL_OK")
</pallas_src>

<mosaic_0001>
module attributes {stable_mosaic.version = 11 : i64} {
  func.func @realnvp_fused_kernel(%arg0: i32, %arg1: memref<8x128xf32, #tpu.memory_space<vmem>>, %arg2: memref<1x128x128xf32, #tpu.memory_space<vmem>>, %arg3: memref<1x1x128xf32, #tpu.memory_space<vmem>>, %arg4: memref<1x128x128xf32, #tpu.memory_space<vmem>>, %arg5: memref<1x1x128xf32, #tpu.memory_space<vmem>>, %arg6: memref<1x128x128xf32, #tpu.memory_space<vmem>>, %arg7: memref<1x1x128xf32, #tpu.memory_space<vmem>>, %arg8: memref<1x128x128xf32, #tpu.memory_space<vmem>>, %arg9: memref<1x1x128xf32, #tpu.memory_space<vmem>>, %arg10: memref<1x128x128xf32, #tpu.memory_space<vmem>>, %arg11: memref<1x1x128xf32, #tpu.memory_space<vmem>>, %arg12: memref<1x128x128xf32, #tpu.memory_space<vmem>>, %arg13: memref<1x1x128xf32, #tpu.memory_space<vmem>>, %arg14: memref<1x1x128xf32, #tpu.memory_space<vmem>>, %arg15: memref<1x1x128xf32, #tpu.memory_space<vmem>>, %arg16: memref<8x128xf32, #tpu.memory_space<vmem>>, %arg17: memref<8x128xf32, #tpu.memory_space<vmem>>, %arg18: memref<8x128xf32, #tpu.memory_space<vmem>>, %arg19: memref<8x128xf32, #tpu.memory_space<vmem>>) attributes {dimension_semantics = [#tpu.dimension_semantics<arbitrary>], iteration_bounds = array<i64: 2>, scalar_prefetch = 0 : i64, scratch_operands = 2 : i64, tpu.core_type = #tpu.core_type<tc>, window_params = [{pipeline_mode = #tpu.pipeline_mode<synchronous>, transform_indices = @transform_0, window_bounds = array<i64: 8, 128>}, {transform_indices = @transform_1, window_bounds = array<i64: 1, 128, 128>}, {transform_indices = @transform_2, window_bounds = array<i64: 1, 1, 128>}, {transform_indices = @transform_3, window_bounds = array<i64: 1, 128, 128>}, {transform_indices = @transform_4, window_bounds = array<i64: 1, 1, 128>}, {transform_indices = @transform_5, window_bounds = array<i64: 1, 128, 128>}, {transform_indices = @transform_6, window_bounds = array<i64: 1, 1, 128>}, {transform_indices = @transform_7, window_bounds = array<i64: 1, 128, 128>}, {transform_indices = @transform_8, window_bounds = array<i64: 1, 1, 128>}, {transform_indices = @transform_9, window_bounds = array<i64: 1, 128, 128>}, {transform_indices = @transform_10, window_bounds = array<i64: 1, 1, 128>}, {transform_indices = @transform_11, window_bounds = array<i64: 1, 128, 128>}, {transform_indices = @transform_12, window_bounds = array<i64: 1, 1, 128>}, {transform_indices = @transform_13, window_bounds = array<i64: 1, 1, 128>}, {transform_indices = @transform_14, window_bounds = array<i64: 1, 1, 128>}, {pipeline_mode = #tpu.pipeline_mode<synchronous>, transform_indices = @transform_15, window_bounds = array<i64: 8, 128>}, {pipeline_mode = #tpu.pipeline_mode<synchronous>, transform_indices = @transform_16, window_bounds = array<i64: 8, 128>}]} {
    %c0_i32 = arith.constant 0 : i32
    %0 = arith.cmpi eq, %arg0, %c0_i32 : i32
    %1 = arith.extui %0 : i1 to i32
    %c0_i32_0 = arith.constant 0 : i32
    %2 = arith.cmpi ne, %1, %c0_i32_0 : i32
    scf.if %2 {
      %c0_71 = arith.constant 0 : index
      %c0_72 = arith.constant 0 : index
      %124 = vector.load %arg1[%c0_71, %c0_72] : memref<8x128xf32, #tpu.memory_space<vmem>>, vector<8x128xf32>
      %c0_73 = arith.constant 0 : index
      %c0_74 = arith.constant 0 : index
      %125 = vector.load %arg18[%c0_73, %c0_74] : memref<8x128xf32, #tpu.memory_space<vmem>>, vector<8x128xf32>
      tpu.vector_store %arg18[%c0_73, %c0_74], %124 {strides = array<i32>} : memref<8x128xf32, #tpu.memory_space<vmem>>, vector<8x128xf32>,
      %cst_75 = arith.constant 0.000000e+00 : f32
      %126 = vector.broadcast %cst_75 : f32 to vector<8x128xf32>
      %c0_76 = arith.constant 0 : index
      %c0_77 = arith.constant 0 : index
      %127 = vector.load %arg19[%c0_76, %c0_77] : memref<8x128xf32, #tpu.memory_space<vmem>>, vector<8x128xf32>
      tpu.vector_store %arg19[%c0_76, %c0_77], %126 {strides = array<i32>} : memref<8x128xf32, #tpu.memory_space<vmem>>, vector<8x128xf32>,
    } else {
    }
    %c0 = arith.constant 0 : index
    %c0_1 = arith.constant 0 : index
    %3 = vector.load %arg18[%c0, %c0_1] : memref<8x128xf32, #tpu.memory_space<vmem>>, vector<8x128xf32>
    %4 = tpu.iota {dimensions = array<i32: 1>} : vector<1x128xi32>
    %5 = vector.broadcast %arg0 : i32 to vector<1x128xi32>
    %6 = arith.addi %4, %5 : vector<1x128xi32>
    %c2_i32 = arith.constant 2 : i32
    %c0_i32_2 = arith.constant 0 : i32
    %7 = arith.cmpi eq, %c2_i32, %c0_i32_2 : i32
    %c1_i32 = arith.constant 1 : i32
    %8 = arith.select %7, %c1_i32, %c2_i32 : i32
    %9 = vector.broadcast %8 : i32 to vector<1x128xi32>
    %10 = arith.remsi %6, %9 : vector<1x128xi32>
    %c0_i32_3 = arith.constant 0 : i32
    %11 = vector.broadcast %c0_i32_3 : i32 to vector<1x128xi32>
    %12 = arith.cmpi ne, %10, %11 : vector<1x128xi32>
    %c0_i32_4 = arith.constant 0 : i32
    %13 = vector.broadcast %c0_i32_4 : i32 to vector<1x128xi32>
    %14 = arith.cmpi slt, %10, %13 : vector<1x128xi32>
    %c0_i32_5 = arith.constant 0 : i32
    %15 = arith.cmpi slt, %8, %c0_i32_5 : i32
    %16 = vector.broadcast %15 : i1 to vector<1x128xi1>
    %17 = vector.broadcast %16 : vector<1x128xi1> to vector<1x128xi1>
    %18 = arith.xori %14, %17 : vector<1x128xi1>
    %19 = arith.andi %18, %12 : vector<1x128xi1>
    %20 = vector.broadcast %8 : i32 to vector<1x128xi32>
    %21 = arith.addi %10, %20 : vector<1x128xi32>
    %22 = arith.select %19, %21, %10 : vector<1x128xi1>, vector<1x128xi32>
    %23 = arith.sitofp %22 : vector<1x128xi32> to vector<1x128xf32>
    %cst = arith.constant 1.000000e+00 : f32
    %24 = vector.broadcast %cst : f32 to vector<1x128xf32>
    %25 = arith.subf %24, %23 : vector<1x128xf32>
    %26 = vector.broadcast %23 : vector<1x128xf32> to vector<8x128xf32>
    %27 = arith.mulf %3, %26 : vector<8x128xf32>
    %c0_6 = arith.constant 0 : index
    %c0_7 = arith.constant 0 : index
    %c0_8 = arith.constant 0 : index
    %28 = vector.load %arg2[%c0_6, %c0_7, %c0_8] : memref<1x128x128xf32, #tpu.memory_space<vmem>>, vector<1x128x128xf32>
    %29 = vector.shape_cast %28 : vector<1x128x128xf32> to vector<128x128xf32>
    %cst_9 = arith.constant dense<0.000000e+00> : vector<8x128xf32>
    %30 = tpu.matmul %27, %29, %cst_9 {dimension_numbers = #tpu.dot_dimension_numbers<[1], [0], [0], [1], [0, 0, 1, 1], [], []>} : vector<8x128xf32>, vector<128x128xf32>, vector<8x128xf32> -> vector<8x128xf32>
    %c0_10 = arith.constant 0 : index
    %c0_11 = arith.constant 0 : index
    %c0_12 = arith.constant 0 : index
    %31 = vector.load %arg3[%c0_10, %c0_11, %c0_12] : memref<1x1x128xf32, #tpu.memory_space<vmem>>, vector<1x1x128xf32>
    %32 = vector.shape_cast %31 : vector<1x1x128xf32> to vector<1x128xf32>
    %33 = vector.broadcast %32 : vector<1x128xf32> to vector<8x128xf32>
    %34 = arith.addf %30, %33 : vector<8x128xf32>
    %35 = math.tanh %34 : vector<8x128xf32>
    %c0_13 = arith.constant 0 : index
    %c0_14 = arith.constant 0 : index
    %c0_15 = arith.constant 0 : index
    %36 = vector.load %arg4[%c0_13, %c0_14, %c0_15] : memref<1x128x128xf32, #tpu.memory_space<vmem>>, vector<1x128x128xf32>
    %37 = vector.shape_cast %36 : vector<1x128x128xf32> to vector<128x128xf32>
    %cst_16 = arith.constant dense<0.000000e+00> : vector<8x128xf32>
    %38 = tpu.matmul %35, %37, %cst_16 {dimension_numbers = #tpu.dot_dimension_numbers<[1], [0], [0], [1], [0, 0, 1, 1], [], []>} : vector<8x128xf32>, vector<128x128xf32>, vector<8x128xf32> -> vector<8x128xf32>
    %c0_17 = arith.constant 0 : index
    %c0_18 = arith.constant 0 : index
    %c0_19 = arith.constant 0 : index
    %39 = vector.load %arg5[%c0_17, %c0_18, %c0_19] : memref<1x1x128xf32, #tpu.memory_space<vmem>>, vector<1x1x128xf32>
    %40 = vector.shape_cast %39 : vector<1x1x128xf32> to vector<1x128xf32>
    %41 = vector.broadcast %40 : vector<1x128xf32> to vector<8x128xf32>
    %42 = arith.addf %38, %41 : vector<8x128xf32>
    %43 = math.tanh %42 : vector<8x128xf32>
    %c0_20 = arith.constant 0 : index
    %c0_21 = arith.constant 0 : index
    %c0_22 = arith.constant 0 : index
    %44 = vector.load %arg6[%c0_20, %c0_21, %c0_22] : memref<1x128x128xf32, #tpu.memory_space<vmem>>, vector<1x128x128xf32>
    %45 = vector.shape_cast %44 : vector<1x128x128xf32> to vector<128x128xf32>
    %cst_23 = arith.constant dense<0.000000e+00> : vector<8x128xf32>
    %46 = tpu.matmul %43, %45, %cst_23 {dimension_numbers = #tpu.dot_dimension_numbers<[1], [0], [0], [1], [0, 0, 1, 1], [], []>} : vector<8x128xf32>, vector<128x128xf32>, vector<8x128xf32> -> vector<8x128xf32>
    %c0_24 = arith.constant 0 : index
    %c0_25 = arith.constant 0 : index
    %c0_26 = arith.constant 0 : index
    %47 = vector.load %arg7[%c0_24, %c0_25, %c0_26] : memref<1x1x128xf32, #tpu.memory_space<vmem>>, vector<1x1x128xf32>
    %48 = vector.shape_cast %47 : vector<1x1x128xf32> to vector<1x128xf32>
    %49 = vector.broadcast %48 : vector<1x128xf32> to vector<8x128xf32>
    %50 = arith.addf %46, %49 : vector<8x128xf32>
    %c0_27 = arith.constant 0 : index
    %c0_28 = arith.constant 0 : index
    %c0_29 = arith.constant 0 : index
    %51 = vector.load %arg8[%c0_27, %c0_28, %c0_29] : memref<1x128x128xf32, #tpu.memory_space<vmem>>, vector<1x128x128xf32>
    %52 = vector.shape_cast %51 : vector<1x128x128xf32> to vector<128x128xf32>
    %cst_30 = arith.constant dense<0.000000e+00> : vector<8x128xf32>
    %53 = tpu.matmul %27, %52, %cst_30 {dimension_numbers = #tpu.dot_dimension_numbers<[1], [0], [0], [1], [0, 0, 1, 1], [], []>} : vector<8x128xf32>, vector<128x128xf32>, vector<8x128xf32> -> vector<8x128xf32>
    %c0_31 = arith.constant 0 : index
    %c0_32 = arith.constant 0 : index
    %c0_33 = arith.constant 0 : index
    %54 = vector.load %arg9[%c0_31, %c0_32, %c0_33] : memref<1x1x128xf32, #tpu.memory_space<vmem>>, vector<1x1x128xf32>
    %55 = vector.shape_cast %54 : vector<1x1x128xf32> to vector<1x128xf32>
    %56 = vector.broadcast %55 : vector<1x128xf32> to vector<8x128xf32>
    %57 = arith.addf %53, %56 : vector<8x128xf32>
    %cst_34 = arith.constant 0.000000e+00 : f32
    %58 = vector.broadcast %cst_34 : f32 to vector<8x128xf32>
    %59 = arith.maximumf %57, %58 : vector<8x128xf32>
    %c0_35 = arith.constant 0 : index
    %c0_36 = arith.constant 0 : index
    %c0_37 = arith.constant 0 : index
    %60 = vector.load %arg10[%c0_35, %c0_36, %c0_37] : memref<1x128x128xf32, #tpu.memory_space<vmem>>, vector<1x128x128xf32>
    %61 = vector.shape_cast %60 : vector<1x128x128xf32> to vector<128x128xf32>
    %cst_38 = arith.constant dense<0.000000e+00> : vector<8x128xf32>
    %62 = tpu.matmul %59, %61, %cst_38 {dimension_numbers = #tpu.dot_dimension_numbers<[1], [0], [0], [1], [0, 0, 1, 1], [], []>} : vector<8x128xf32>, vector<128x128xf32>, vector<8x128xf32> -> vector<8x128xf32>
    %c0_39 = arith.constant 0 : index
    %c0_40 = arith.constant 0 : index
    %c0_41 = arith.constant 0 : index
    %63 = vector.load %arg11[%c0_39, %c0_40, %c0_41] : memref<1x1x128xf32, #tpu.memory_space<vmem>>, vector<1x1x128xf32>
    %64 = vector.shape_cast %63 : vector<1x1x128xf32> to vector<1x128xf32>
    %65 = vector.broadcast %64 : vector<1x128xf32> to vector<8x128xf32>
    %66 = arith.addf %62, %65 : vector<8x128xf32>
    %cst_42 = arith.constant 0.000000e+00 : f32
    %67 = vector.broadcast %cst_42 : f32 to vector<8x128xf32>
    %68 = arith.maximumf %66, %67 : vector<8x128xf32>
    %c0_43 = arith.constant 0 : index
    %c0_44 = arith.constant 0 : index
    %c0_45 = arith.constant 0 : index
    %69 = vector.load %arg12[%c0_43, %c0_44, %c0_45] : memref<1x128x128xf32, #tpu.memory_space<vmem>>, vector<1x128x128xf32>
    %70 = vector.shape_cast %69 : vector<1x128x128xf32> to vector<128x128xf32>
    %cst_46 = arith.constant dense<0.000000e+00> : vector<8x128xf32>
    %71 = tpu.matmul %68, %70, %cst_46 {dimension_numbers = #tpu.dot_dimension_numbers<[1], [0], [0], [1], [0, 0, 1, 1], [], []>} : vector<8x128xf32>, vector<128x128xf32>, vector<8x128xf32> -> vector<8x128xf32>
    %c0_47 = arith.constant 0 : index
    %c0_48 = arith.constant 0 : index
    %c0_49 = arith.constant 0 : index
    %72 = vector.load %arg13[%c0_47, %c0_48, %c0_49] : memref<1x1x128xf32, #tpu.memory_space<vmem>>, vector<1x1x128xf32>
    %73 = vector.shape_cast %72 : vector<1x1x128xf32> to vector<1x128xf32>
    %74 = vector.broadcast %73 : vector<1x128xf32> to vector<8x128xf32>
    %75 = arith.addf %71, %74 : vector<8x128xf32>
    %76 = arith.subf %3, %75 : vector<8x128xf32>
    %77 = vector.broadcast %25 : vector<1x128xf32> to vector<8x128xf32>
    %78 = arith.mulf %77, %76 : vector<8x128xf32>
    %cst_50 = arith.constant 0.000000e+00 : f32
    %79 = vector.broadcast %cst_50 : f32 to vector<8x128xf32>
    %80 = arith.subf %79, %50 : vector<8x128xf32>
    %81 = math.exp %80 : vector<8x128xf32>
    %82 = arith.mulf %78, %81 : vector<8x128xf32>
    %83 = arith.addf %27, %82 : vector<8x128xf32>
    %84 = vector.broadcast %25 : vector<1x128xf32> to vector<8x128xf32>
    %85 = arith.mulf %84, %50 : vector<8x128xf32>
    %cst_51 = arith.constant 0.000000e+00 : f32
    %86 = vector.broadcast %cst_51 : f32 to vector<8x128xf32>
    %87 = arith.subf %86, %85 : vector<8x128xf32>
    %cst_52 = arith.constant dense<0.000000e+00> : vector<128xf32>
    %88 = vector.multi_reduction <add>, %83, %cst_52 [0] : vector<8x128xf32> to vector<128xf32>
    %89 = vector.shape_cast %88 : vector<128xf32> to vector<1x128xf32>
    %cst_53 = arith.constant 8.000000e+00 : f32
    %90 = vector.broadcast %cst_53 : f32 to vector<1x128xf32>
    %91 = arith.divf %89, %90 : vector<1x128xf32>
    %92 = vector.broadcast %91 : vector<1x128xf32> to vector<8x128xf32>
    %93 = arith.subf %83, %92 : vector<8x128xf32>
    %94 = arith.mulf %93, %93 : vector<8x128xf32>
    %cst_54 = arith.constant dense<0.000000e+00> : vector<128xf32>
    %95 = vector.multi_reduction <add>, %94, %cst_54 [0] : vector<8x128xf32> to vector<128xf32>
    %96 = vector.shape_cast %95 : vector<128xf32> to vector<1x128xf32>
    %cst_55 = arith.constant 0.142857149 : f32
    %97 = vector.broadcast %cst_55 : f32 to vector<1x128xf32>
    %98 = arith.mulf %96, %97 : vector<1x128xf32>
    %cst_56 = arith.constant 9.99999974E-6 : f32
    %99 = vector.broadcast %cst_56 : f32 to vector<1x128xf32>
    %100 = arith.addf %98, %99 : vector<1x128xf32>
    %101 = math.rsqrt %100 : vector<1x128xf32>
    %102 = vector.broadcast %101 : vector<1x128xf32> to vector<8x128xf32>
    %103 = arith.mulf %93, %102 : vector<8x128xf32>
    %c0_57 = arith.constant 0 : index
    %c0_58 = arith.constant 0 : index
    %c0_59 = arith.constant 0 : index
    %104 = vector.load %arg14[%c0_57, %c0_58, %c0_59] : memref<1x1x128xf32, #tpu.memory_space<vmem>>, vector<1x1x128xf32>
    %105 = vector.shape_cast %104 : vector<1x1x128xf32> to vector<1x128xf32>
    %106 = math.exp %105 : vector<1x128xf32>
    %107 = vector.broadcast %106 : vector<1x128xf32> to vector<8x128xf32>
    %108 = arith.mulf %107, %103 : vector<8x128xf32>
    %c0_60 = arith.constant 0 : index
    %c0_61 = arith.constant 0 : index
    %c0_62 = arith.constant 0 : index
    %109 = vector.load %arg15[%c0_60, %c0_61, %c0_62] : memref<1x1x128xf32, #tpu.memory_space<vmem>>, vector<1x1x128xf32>
    %110 = vector.shape_cast %109 : vector<1x1x128xf32> to vector<1x128xf32>
    %111 = vector.broadcast %110 : vector<1x128xf32> to vector<8x128xf32>
    %112 = arith.addf %108, %111 : vector<8x128xf32>
    %113 = math.log %101 : vector<1x128xf32>
    %114 = arith.addf %105, %113 : vector<1x128xf32>
    %c0_63 = arith.constant 0 : index
    %c0_64 = arith.constant 0 : index
    %115 = vector.load %arg18[%c0_63, %c0_64] : memref<8x128xf32, #tpu.memory_space<vmem>>, vector<8x128xf32>
    tpu.vector_store %arg18[%c0_63, %c0_64], %112 {strides = array<i32>} : memref<8x128xf32, #tpu.memory_space<vmem>>, vector<8x128xf32>,
    %c0_65 = arith.constant 0 : index
    %c0_66 = arith.constant 0 : index
    %116 = vector.load %arg19[%c0_65, %c0_66] : memref<8x128xf32, #tpu.memory_space<vmem>>, vector<8x128xf32>
    %117 = arith.addf %116, %87 : vector<8x128xf32>
    %118 = vector.broadcast %114 : vector<1x128xf32> to vector<8x128xf32>
    %119 = arith.addf %117, %118 : vector<8x128xf32>
    %c0_67 = arith.constant 0 : index
    %c0_68 = arith.constant 0 : index
    %120 = vector.load %arg19[%c0_67, %c0_68] : memref<8x128xf32, #tpu.memory_space<vmem>>, vector<8x128xf32>
    tpu.vector_store %arg19[%c0_67, %c0_68], %119 {strides = array<i32>} : memref<8x128xf32, #tpu.memory_space<vmem>>, vector<8x128xf32>,
    %c1_i32_69 = arith.constant 1 : i32
    %121 = arith.cmpi eq, %arg0, %c1_i32_69 : i32
    %122 = arith.extui %121 : i1 to i32
    %c0_i32_70 = arith.constant 0 : i32
    %123 = arith.cmpi ne, %122, %c0_i32_70 : i32
    scf.if %123 {
      %c0_71 = arith.constant 0 : index
      %c0_72 = arith.constant 0 : index
      %124 = vector.load %arg18[%c0_71, %c0_72] : memref<8x128xf32, #tpu.memory_space<vmem>>, vector<8x128xf32>
      %c0_73 = arith.constant 0 : index
      %c0_74 = arith.constant 0 : index
      %125 = vector.load %arg16[%c0_73, %c0_74] : memref<8x128xf32, #tpu.memory_space<vmem>>, vector<8x128xf32>
      tpu.vector_store %arg16[%c0_73, %c0_74], %124 {strides = array<i32>} : memref<8x128xf32, #tpu.memory_space<vmem>>, vector<8x128xf32>,
      %c0_75 = arith.constant 0 : index
      %c0_76 = arith.constant 0 : index
      %126 = vector.load %arg19[%c0_75, %c0_76] : memref<8x128xf32, #tpu.memory_space<vmem>>, vector<8x128xf32>
      %c0_77 = arith.constant 0 : index
      %c0_78 = arith.constant 0 : index
      %127 = vector.load %arg17[%c0_77, %c0_78] : memref<8x128xf32, #tpu.memory_space<vmem>>, vector<8x128xf32>
      tpu.vector_store %arg17[%c0_77, %c0_78], %126 {strides = array<i32>} : memref<8x128xf32, #tpu.memory_space<vmem>>, vector<8x128xf32>,
    } else {
    }
    return
  }
  func.func @transform_0(%arg0: i32) -> (i32, i32) {
    %c0_i32 = arith.constant 0 : i32
    %c0_i32_0 = arith.constant 0 : i32
    %c0_i32_1 = arith.constant 0 : i32
    return %c0_i32, %c0_i32_0 : i32, i32
  }
  func.func @transform_1(%arg0: i32) -> (i32, i32, i32) {
    %c0_i32 = arith.constant 0 : i32
    %c0_i32_0 = arith.constant 0 : i32
    %c0_i32_1 = arith.constant 0 : i32
    return %arg0, %c0_i32, %c0_i32_0 : i32, i32, i32
  }
  func.func @transform_2(%arg0: i32) -> (i32, i32, i32) {
    %c0_i32 = arith.constant 0 : i32
    %c0_i32_0 = arith.constant 0 : i32
    %c0_i32_1 = arith.constant 0 : i32
    return %arg0, %c0_i32, %c0_i32_0 : i32, i32, i32
  }
  func.func @transform_3(%arg0: i32) -> (i32, i32, i32) {
    %c0_i32 = arith.constant 0 : i32
    %c0_i32_0 = arith.constant 0 : i32
    %c0_i32_1 = arith.constant 0 : i32
    return %arg0, %c0_i32, %c0_i32_0 : i32, i32, i32
  }
  func.func @transform_4(%arg0: i32) -> (i32, i32, i32) {
    %c0_i32 = arith.constant 0 : i32
    %c0_i32_0 = arith.constant 0 : i32
    %c0_i32_1 = arith.constant 0 : i32
    return %arg0, %c0_i32, %c0_i32_0 : i32, i32, i32
  }
  func.func @transform_5(%arg0: i32) -> (i32, i32, i32) {
    %c0_i32 = arith.constant 0 : i32
    %c0_i32_0 = arith.constant 0 : i32
    %c0_i32_1 = arith.constant 0 : i32
    return %arg0, %c0_i32, %c0_i32_0 : i32, i32, i32
  }
  func.func @transform_6(%arg0: i32) -> (i32, i32, i32) {
    %c0_i32 = arith.constant 0 : i32
    %c0_i32_0 = arith.constant 0 : i32
    %c0_i32_1 = arith.constant 0 : i32
    return %arg0, %c0_i32, %c0_i32_0 : i32, i32, i32
  }
  func.func @transform_7(%arg0: i32) -> (i32, i32, i32) {
    %c0_i32 = arith.constant 0 : i32
    %c0_i32_0 = arith.constant 0 : i32
    %c0_i32_1 = arith.constant 0 : i32
    return %arg0, %c0_i32, %c0_i32_0 : i32, i32, i32
  }
  func.func @transform_8(%arg0: i32) -> (i32, i32, i32) {
    %c0_i32 = arith.constant 0 : i32
    %c0_i32_0 = arith.constant 0 : i32
    %c0_i32_1 = arith.constant 0 : i32
    return %arg0, %c0_i32, %c0_i32_0 : i32, i32, i32
  }
  func.func @transform_9(%arg0: i32) -> (i32, i32, i32) {
    %c0_i32 = arith.constant 0 : i32
    %c0_i32_0 = arith.constant 0 : i32
    %c0_i32_1 = arith.constant 0 : i32
    return %arg0, %c0_i32, %c0_i32_0 : i32, i32, i32
  }
  func.func @transform_10(%arg0: i32) -> (i32, i32, i32) {
    %c0_i32 = arith.constant 0 : i32
    %c0_i32_0 = arith.constant 0 : i32
    %c0_i32_1 = arith.constant 0 : i32
    return %arg0, %c0_i32, %c0_i32_0 : i32, i32, i32
  }
  func.func @transform_11(%arg0: i32) -> (i32, i32, i32) {
    %c0_i32 = arith.constant 0 : i32
    %c0_i32_0 = arith.constant 0 : i32
    %c0_i32_1 = arith.constant 0 : i32
    return %arg0, %c0_i32, %c0_i32_0 : i32, i32, i32
  }
  func.func @transform_12(%arg0: i32) -> (i32, i32, i32) {
    %c0_i32 = arith.constant 0 : i32
    %c0_i32_0 = arith.constant 0 : i32
    %c0_i32_1 = arith.constant 0 : i32
    return %arg0, %c0_i32, %c0_i32_0 : i32, i32, i32
  }
  func.func @transform_13(%arg0: i32) -> (i32, i32, i32) {
    %c0_i32 = arith.constant 0 : i32
    %c0_i32_0 = arith.constant 0 : i32
    %c0_i32_1 = arith.constant 0 : i32
    return %arg0, %c0_i32, %c0_i32_0 : i32, i32, i32
  }
  func.func @transform_14(%arg0: i32) -> (i32, i32, i32) {
    %c0_i32 = arith.constant 0 : i32
    %c0_i32_0 = arith.constant 0 : i32
    %c0_i32_1 = arith.constant 0 : i32
    return %arg0, %c0_i32, %c0_i32_0 : i32, i32, i32
  }
  func.func @transform_15(%arg0: i32) -> (i32, i32) {
    %c0_i32 = arith.constant 0 : i32
    %c0_i32_0 = arith.constant 0 : i32
    %c0_i32_1 = arith.constant 0 : i32
    return %c0_i32, %c0_i32_0 : i32, i32
  }
  func.func @transform_16(%arg0: i32) -> (i32, i32) {
    %c0_i32 = arith.constant 0 : i32
    %c0_i32_0 = arith.constant 0 : i32
    %c0_i32_1 = arith.constant 0 : i32
    return %c0_i32, %c0_i32_0 : i32, i32
  }
}

</mosaic_0001>

<llo_original>
// kernel: realnvp_forward.1
$region0: #{realnvp_forward.1}
  #allocation0 [shape = 'u32[]', space=smem, size = 0x4, offset = 0x4, fixed_abs, tag = 'smem constant byte address 0x4 - core index']
  #allocation1 [shape = 'u32[144,128]{1,0:T(1,128)}', space=vmem, size = 0x12000, scoped, tag = 'internal scratch']
  #allocation2 [shape = 'f32[8,128]{1,0:T(8,128)}', space=vmem, size = 0x1000, scoped, tag = 'scratch operand']
  #allocation3 [shape = 'f32[8,128]{1,0:T(8,128)}', space=vmem, size = 0x1000, scoped, tag = 'scratch operand']
  %s0 = inlined_call_operand.vmem [shape: f32[8,128], index: 0, kind: input, shape index: {}]
  %s1 = inlined_call_operand.vmem [shape: f32[2,128,128], index: 1, kind: input, shape index: {}]
  %s2 = inlined_call_operand.vmem [shape: f32[2,1,128], index: 2, kind: input, shape index: {}]
  %s3 = inlined_call_operand.vmem [shape: f32[2,128,128], index: 3, kind: input, shape index: {}]
  %s4 = inlined_call_operand.vmem [shape: f32[2,1,128], index: 4, kind: input, shape index: {}]
  %s5 = inlined_call_operand.vmem [shape: f32[2,128,128], index: 5, kind: input, shape index: {}]
  %s6 = inlined_call_operand.vmem [shape: f32[2,1,128], index: 6, kind: input, shape index: {}]
  %s7 = inlined_call_operand.vmem [shape: f32[2,128,128], index: 7, kind: input, shape index: {}]
  %s8 = inlined_call_operand.vmem [shape: f32[2,1,128], index: 8, kind: input, shape index: {}]
  %s9 = inlined_call_operand.vmem [shape: f32[2,128,128], index: 9, kind: input, shape index: {}]
  %s10 = inlined_call_operand.vmem [shape: f32[2,1,128], index: 10, kind: input, shape index: {}]
  %s11 = inlined_call_operand.vmem [shape: f32[2,128,128], index: 11, kind: input, shape index: {}]
  %s12 = inlined_call_operand.vmem [shape: f32[2,1,128], index: 12, kind: input, shape index: {}]
  %s13 = inlined_call_operand.vmem [shape: f32[2,1,128], index: 13, kind: input, shape index: {}]
  %s14 = inlined_call_operand.vmem [shape: f32[2,1,128], index: 14, kind: input, shape index: {}]
  %s15 = inlined_call_operand.hbm [shape: f32[8,128], index: 15, kind: output, shape index: {0}]
  %s16 = inlined_call_operand.hbm [shape: f32[8,128], index: 16, kind: output, shape index: {1}]
  %17 = xla_tuple %s15, %s16
  %s18 = sld [smem:[#allocation0]]
  $region109: #{realnvp_forward.1} parent=0
    _
  %s20 = ssub.s32 1, %s18
  %s21 = scalar_select 0, %s20, %s18
  $region1: #{realnvp_forward.1} parent=0
    #allocation4 [shape = 'u8[4096]{0}', space=vmem, size = 0x1000, scoped, tag = 'output window, operand 0, single buffered']
    #allocation5 [shape = 's32[2]{0}', space=sflag, size = 0x8, scoped, tag = 'scoped memory for realnvp_forward.1']
    #allocation6 [shape = 'u8[4096]{0}', space=vmem, size = 0x1000, scoped, tag = 'output window, operand 1, single buffered']
    #allocation7 [shape = 's32[1]{0}', space=sflag, size = 0x4, scoped, tag = 'scoped memory for realnvp_forward.1']
    %22 = vsyncpa [#allocation5], 0
    %23 = vsyncpa [#allocation7], 0
    loop: start=0, step=1, limit=4
    $region2: #{realnvp_forward.1} parent=1 // loop_pre_header
      _
    $region3: #{realnvp_forward.1} parent=1 // loop_header
      %s25 = sphi 0, %s29
      %p26 = scmp.ge.s32.totalorder %s25, 4
      %s33 = sphi 0, %s33
      %s35 = sphi 0, %s33
      %s36 = sphi 0, %s35
      %s50 = sphi 0, %s36
      %s56 = sphi 0, %s58
      %s59 = sphi 0, %s56
      %s60 = sphi 0, %s59
      %s76 = sphi 0, %s60
      %s82 = sphi 0, %s84
      %s85 = sphi 0, %s82
      %s86 = sphi 0, %s85
      %s102 = sphi 0, %s86
      %s108 = sphi 0, %s110
      %s111 = sphi 0, %s108
      %s112 = sphi 0, %s111
      %s128 = sphi 0, %s112
      %s134 = sphi 0, %s136
      %s137 = sphi 0, %s134
      %s138 = sphi 0, %s137
      %s154 = sphi 0, %s138
      %s160 = sphi 0, %s162
      %s163 = sphi 0, %s160
      %s164 = sphi 0, %s163
      %s180 = sphi 0, %s164
      %s186 = sphi 0, %s188
      %s189 = sphi 0, %s186
      %s190 = sphi 0, %s189
      %s206 = sphi 0, %s190
      %s212 = sphi 0, %s214
      %s215 = sphi 0, %s212
      %s216 = sphi 0, %s215
      %s232 = sphi 0, %s216
      %s238 = sphi 0, %s240
      %s241 = sphi 0, %s238
      %s242 = sphi 0, %s241
      %s258 = sphi 0, %s242
      %s264 = sphi 0, %s266
      %s267 = sphi 0, %s264
      %s268 = sphi 0, %s267
      %s284 = sphi 0, %s268
      %s290 = sphi 0, %s292
      %s293 = sphi 0, %s290
      %s294 = sphi 0, %s293
      %s310 = sphi 0, %s294
      %s316 = sphi 0, %s318
      %s319 = sphi 0, %s316
      %s320 = sphi 0, %s319
      %s336 = sphi 0, %s320
      %s342 = sphi 0, %s344
      %s345 = sphi 0, %s342
      %s346 = sphi 0, %s345
      %s362 = sphi 0, %s346
      %s368 = sphi 0, %s370
      %s371 = sphi 0, %s368
      %s372 = sphi 0, %s371
      %s388 = sphi 0, %s372
      %s394 = sphi 0, %s396
      %s397 = sphi 0, %s394
      %s398 = sphi 0, %s397
      %s414 = sphi 0, %s398
      %s418 = sphi 0, %s418
      %s420 = sphi 0, %s418
      %s421 = sphi 0, %s420
      %s435 = sphi 0, %s421
      %s439 = sphi 0, %s439
      %s441 = sphi 0, %s439
      %s442 = sphi 0, %s441
      %s456 = sphi 0, %s442
    $region4: #{realnvp_forward.1} parent=1 // loop_header_branch
      %28 = sbr.rel (%p26) target = $region8
    $region5: #{realnvp_forward.1} parent=1 // loop_body
      %s30 = ssub.s32 %s25, 1
      %s31 = ssub.s32 %s25, 2
      %s32 = sadd.s32 %s25, 1
      %s34 = sadd.s32 %s33, 1
      %p37 = scmp.eq.s32.totalorder %s25, 1
      %p38 = scmp.ne.s32.totalorder %s33, %s35
      %p39 = scmp.eq.s32.totalorder %s25, 0
      %p40 = por %p38, %p39
      %p41 = scmp.ne.s32.totalorder %s33, %s35
      %p42 = scmp.eq.s32.totalorder %s30, 1
      %p43 = por %p41, %p42
      %p44 = scmp.ne.s32.totalorder %s35, %s36
      %p45 = scmp.eq.s32.totalorder %s30, 0
      %p46 = por %p44, %p45
      %p47 = scmp.ne.s32.totalorder %s35, %s36
      %p48 = scmp.eq.s32.totalorder %s31, 1
      %p49 = por %p47, %p48
      %p51 = scmp.ne.s32.totalorder %s36, %s50
      %p52 = scmp.eq.s32.totalorder %s31, 0
      %p53 = por %p51, %p52
      %s54 = ssub.s32 %s25, %s32
      %p55 = scmp.eq.s32.totalorder %s54, 0
      %s57 = sadd.s32 %s56, 1
      %s58 = scalar_select %p55, %s56, %s57
      %p61 = pneg %p55
      %p62 = scmp.eq.s32.totalorder %s25, 1
      %p63 = por %p61, %p62
      %p64 = scmp.ne.s32.totalorder %s56, %s59
      %p65 = scmp.eq.s32.totalorder %s25, 0
      %p66 = por %p64, %p65
      %p67 = scmp.ne.s32.totalorder %s56, %s59
      %p68 = scmp.eq.s32.totalorder %s30, 1
      %p69 = por %p67, %p68
      %p70 = scmp.ne.s32.totalorder %s59, %s60
      %p71 = scmp.eq.s32.totalorder %s30, 0
      %p72 = por %p70, %p71
      %p73 = scmp.ne.s32.totalorder %s59, %s60
      %p74 = scmp.eq.s32.totalorder %s31, 1
      %p75 = por %p73, %p74
      %p77 = scmp.ne.s32.totalorder %s60, %s76
      %p78 = scmp.eq.s32.totalorder %s31, 0
      %p79 = por %p77, %p78
      %s80 = ssub.s32 %s25, %s32
      %p81 = scmp.eq.s32.totalorder %s80, 0
      %s83 = sadd.s32 %s82, 1
      %s84 = scalar_select %p81, %s82, %s83
      %p87 = pneg %p81
      %p88 = scmp.eq.s32.totalorder %s25, 1
      %p89 = por %p87, %p88
      %p90 = scmp.ne.s32.totalorder %s82, %s85
      %p91 = scmp.eq.s32.totalorder %s25, 0
      %p92 = por %p90, %p91
      %p93 = scmp.ne.s32.totalorder %s82, %s85
      %p94 = scmp.eq.s32.totalorder %s30, 1
      %p95 = por %p93, %p94
      %p96 = scmp.ne.s32.totalorder %s85, %s86
      %p97 = scmp.eq.s32.totalorder %s30, 0
      %p98 = por %p96, %p97
      %p99 = scmp.ne.s32.totalorder %s85, %s86
      %p100 = scmp.eq.s32.totalorder %s31, 1
      %p101 = por %p99, %p100
      %p103 = scmp.ne.s32.totalorder %s86, %s102
      %p104 = scmp.eq.s32.totalorder %s31, 0
      %p105 = por %p103, %p104
      %s106 = ssub.s32 %s25, %s32
      %p107 = scmp.eq.s32.totalorder %s106, 0
      %s109 = sadd.s32 %s108, 1
      %s110 = scalar_select %p107, %s108, %s109
      %p113 = pneg %p107
      %p114 = scmp.eq.s32.totalorder %s25, 1
      %p115 = por %p113, %p114
      %p116 = scmp.ne.s32.totalorder %s108, %s111
      %p117 = scmp.eq.s32.totalorder %s25, 0
      %p118 = por %p116, %p117
      %p119 = scmp.ne.s32.totalorder %s108, %s111
      %p120 = scmp.eq.s32.totalorder %s30, 1
      %p121 = por %p119, %p120
      %p122 = scmp.ne.s32.totalorder %s111, %s112
      %p123 = scmp.eq.s32.totalorder %s30, 0
      %p124 = por %p122, %p123
      %p125 = scmp.ne.s32.totalorder %s111, %s112
      %p126 = scmp.eq.s32.totalorder %s31, 1
      %p127 = por %p125, %p126
      %p129 = scmp.ne.s32.totalorder %s112, %s128
      %p130 = scmp.eq.s32.totalorder %s31, 0
      %p131 = por %p129, %p130
      %s132 = ssub.s32 %s25, %s32
      %p133 = scmp.eq.s32.totalorder %s132, 0
      %s135 = sadd.s32 %s134, 1
      %s136 = scalar_select %p133, %s134, %s135
      %p139 = pneg %p133
      %p140 = scmp.eq.s32.totalorder %s25, 1
      %p141 = por %p139, %p140
      %p142 = scmp.ne.s32.totalorder %s134, %s137
      %p143 = scmp.eq.s32.totalorder %s25, 0
      %p144 = por %p142, %p143
      %p145 = scmp.ne.s32.totalorder %s134, %s137
      %p146 = scmp.eq.s32.totalorder %s30, 1
      %p147 = por %p145, %p146
      %p148 = scmp.ne.s32.totalorder %s137, %s138
      %p149 = scmp.eq.s32.totalorder %s30, 0
      %p150 = por %p148, %p149
      %p151 = scmp.ne.s32.totalorder %s137, %s138
      %p152 = scmp.eq.s32.totalorder %s31, 1
      %p153 = por %p151, %p152
      %p155 = scmp.ne.s32.totalorder %s138, %s154
      %p156 = scmp.eq.s32.totalorder %s31, 0
      %p157 = por %p155, %p156
      %s158 = ssub.s32 %s25, %s32
      %p159 = scmp.eq.s32.totalorder %s158, 0
      %s161 = sadd.s32 %s160, 1
      %s162 = scalar_select %p159, %s160, %s161
      %p165 = pneg %p159
      %p166 = scmp.eq.s32.totalorder %s25, 1
      %p167 = por %p165, %p166
      %p168 = scmp.ne.s32.totalorder %s160, %s163
      %p169 = scmp.eq.s32.totalorder %s25, 0
      %p170 = por %p168, %p169
      %p171 = scmp.ne.s32.totalorder %s160, %s163
      %p172 = scmp.eq.s32.totalorder %s30, 1
      %p173 = por %p171, %p172
      %p174 = scmp.ne.s32.totalorder %s163, %s164
      %p175 = scmp.eq.s32.totalorder %s30, 0
      %p176 = por %p174, %p175
      %p177 = scmp.ne.s32.totalorder %s163, %s164
      %p178 = scmp.eq.s32.totalorder %s31, 1
      %p179 = por %p177, %p178
      %p181 = scmp.ne.s32.totalorder %s164, %s180
      %p182 = scmp.eq.s32.totalorder %s31, 0
      %p183 = por %p181, %p182
      %s184 = ssub.s32 %s25, %s32
      %p185 = scmp.eq.s32.totalorder %s184, 0
      %s187 = sadd.s32 %s186, 1
      %s188 = scalar_select %p185, %s186, %s187
      %p191 = pneg %p185
      %p192 = scmp.eq.s32.totalorder %s25, 1
      %p193 = por %p191, %p192
      %p194 = scmp.ne.s32.totalorder %s186, %s189
      %p195 = scmp.eq.s32.totalorder %s25, 0
      %p196 = por %p194, %p195
      %p197 = scmp.ne.s32.totalorder %s186, %s189
      %p198 = scmp.eq.s32.totalorder %s30, 1
      %p199 = por %p197, %p198
      %p200 = scmp.ne.s32.totalorder %s189, %s190
      %p201 = scmp.eq.s32.totalorder %s30, 0
      %p202 = por %p200, %p201
      %p203 = scmp.ne.s32.totalorder %s189, %s190
      %p204 = scmp.eq.s32.totalorder %s31, 1
      %p205 = por %p203, %p204
      %p207 = scmp.ne.s32.totalorder %s190, %s206
      %p208 = scmp.eq.s32.totalorder %s31, 0
      %p209 = por %p207, %p208
      %s210 = ssub.s32 %s25, %s32
      %p211 = scmp.eq.s32.totalorder %s210, 0
      %s213 = sadd.s32 %s212, 1
      %s214 = scalar_select %p211, %s212, %s213
      %p217 = pneg %p211
      %p218 = scmp.eq.s32.totalorder %s25, 1
      %p219 = por %p217, %p218
      %p220 = scmp.ne.s32.totalorder %s212, %s215
      %p221 = scmp.eq.s32.totalorder %s25, 0
      %p222 = por %p220, %p221
      %p223 = scmp.ne.s32.totalorder %s212, %s215
      %p224 = scmp.eq.s32.totalorder %s30, 1
      %p225 = por %p223, %p224
      %p226 = scmp.ne.s32.totalorder %s215, %s216
      %p227 = scmp.eq.s32.totalorder %s30, 0
      %p228 = por %p226, %p227
      %p229 = scmp.ne.s32.totalorder %s215, %s216
      %p230 = scmp.eq.s32.totalorder %s31, 1
      %p231 = por %p229, %p230
      %p233 = scmp.ne.s32.totalorder %s216, %s232
      %p234 = scmp.eq.s32.totalorder %s31, 0
      %p235 = por %p233, %p234
      %s236 = ssub.s32 %s25, %s32
      %p237 = scmp.eq.s32.totalorder %s236, 0
      %s239 = sadd.s32 %s238, 1
      %s240 = scalar_select %p237, %s238, %s239
      %p243 = pneg %p237
      %p244 = scmp.eq.s32.totalorder %s25, 1
      %p245 = por %p243, %p244
      %p246 = scmp.ne.s32.totalorder %s238, %s241
      %p247 = scmp.eq.s32.totalorder %s25, 0
      %p248 = por %p246, %p247
      %p249 = scmp.ne.s32.totalorder %s238, %s241
      %p250 = scmp.eq.s32.totalorder %s30, 1
      %p251 = por %p249, %p250
      %p252 = scmp.ne.s32.totalorder %s241, %s242
      %p253 = scmp.eq.s32.totalorder %s30, 0
      %p254 = por %p252, %p253
      %p255 = scmp.ne.s32.totalorder %s241, %s242
      %p256 = scmp.eq.s32.totalorder %s31, 1
      %p257 = por %p255, %p256
      %p259 = scmp.ne.s32.totalorder %s242, %s258
      %p260 = scmp.eq.s32.totalorder %s31, 0
      %p261 = por %p259, %p260
      %s262 = ssub.s32 %s25, %s32
      %p263 = scmp.eq.s32.totalorder %s262, 0
      %s265 = sadd.s32 %s264, 1
      %s266 = scalar_select %p263, %s264, %s265
      %p269 = pneg %p263
      %p270 = scmp.eq.s32.totalorder %s25, 1
      %p271 = por %p269, %p270
      %p272 = scmp.ne.s32.totalorder %s264, %s267
      %p273 = scmp.eq.s32.totalorder %s25, 0
      %p274 = por %p272, %p273
      %p275 = scmp.ne.s32.totalorder %s264, %s267
      %p276 = scmp.eq.s32.totalorder %s30, 1
      %p277 = por %p275, %p276
      %p278 = scmp.ne.s32.totalorder %s267, %s268
      %p279 = scmp.eq.s32.totalorder %s30, 0
      %p280 = por %p278, %p279
      %p281 = scmp.ne.s32.totalorder %s267, %s268
      %p282 = scmp.eq.s32.totalorder %s31, 1
      %p283 = por %p281, %p282
      %p285 = scmp.ne.s32.totalorder %s268, %s284
      %p286 = scmp.eq.s32.totalorder %s31, 0
      %p287 = por %p285, %p286
      %s288 = ssub.s32 %s25, %s32
      %p289 = scmp.eq.s32.totalorder %s288, 0
      %s291 = sadd.s32 %s290, 1
      %s292 = scalar_select %p289, %s290, %s291
      %p295 = pneg %p289
      %p296 = scmp.eq.s32.totalorder %s25, 1
      %p297 = por %p295, %p296
      %p298 = scmp.ne.s32.totalorder %s290, %s293
      %p299 = scmp.eq.s32.totalorder %s25, 0
      %p300 = por %p298, %p299
      %p301 = scmp.ne.s32.totalorder %s290, %s293
      %p302 = scmp.eq.s32.totalorder %s30, 1
      %p303 = por %p301, %p302
      %p304 = scmp.ne.s32.totalorder %s293, %s294
      %p305 = scmp.eq.s32.totalorder %s30, 0
      %p306 = por %p304, %p305
      %p307 = scmp.ne.s32.totalorder %s293, %s294
      %p308 = scmp.eq.s32.totalorder %s31, 1
      %p309 = por %p307, %p308
      %p311 = scmp.ne.s32.totalorder %s294, %s310
      %p312 = scmp.eq.s32.totalorder %s31, 0
      %p313 = por %p311, %p312
      %s314 = ssub.s32 %s25, %s32
      %p315 = scmp.eq.s32.totalorder %s314, 0
      %s317 = sadd.s32 %s316, 1
      %s318 = scalar_select %p315, %s316, %s317
      %p321 = pneg %p315
      %p322 = scmp.eq.s32.totalorder %s25, 1
      %p323 = por %p321, %p322
      %p324 = scmp.ne.s32.totalorder %s316, %s319
      %p325 = scmp.eq.s32.totalorder %s25, 0
      %p326 = por %p324, %p325
      %p327 = scmp.ne.s32.totalorder %s316, %s319
      %p328 = scmp.eq.s32.totalorder %s30, 1
      %p329 = por %p327, %p328
      %p330 = scmp.ne.s32.totalorder %s319, %s320
      %p331 = scmp.eq.s32.totalorder %s30, 0
      %p332 = por %p330, %p331
      %p333 = scmp.ne.s32.totalorder %s319, %s320
      %p334 = scmp.eq.s32.totalorder %s31, 1
      %p335 = por %p333, %p334
      %p337 = scmp.ne.s32.totalorder %s320, %s336
      %p338 = scmp.eq.s32.totalorder %s31, 0
      %p339 = por %p337, %p338
      %s340 = ssub.s32 %s25, %s32
      %p341 = scmp.eq.s32.totalorder %s340, 0
      %s343 = sadd.s32 %s342, 1
      %s344 = scalar_select %p341, %s342, %s343
      %p347 = pneg %p341
      %p348 = scmp.eq.s32.totalorder %s25, 1
      %p349 = por %p347, %p348
      %p350 = scmp.ne.s32.totalorder %s342, %s345
      %p351 = scmp.eq.s32.totalorder %s25, 0
      %p352 = por %p350, %p351
      %p353 = scmp.ne.s32.totalorder %s342, %s345
      %p354 = scmp.eq.s32.totalorder %s30, 1
      %p355 = por %p353, %p354
      %p356 = scmp.ne.s32.totalorder %s345, %s346
      %p357 = scmp.eq.s32.totalorder %s30, 0
      %p358 = por %p356, %p357
      %p359 = scmp.ne.s32.totalorder %s345, %s346
      %p360 = scmp.eq.s32.totalorder %s31, 1
      %p361 = por %p359, %p360
      %p363 = scmp.ne.s32.totalorder %s346, %s362
      %p364 = scmp.eq.s32.totalorder %s31, 0
      %p365 = por %p363, %p364
      %s366 = ssub.s32 %s25, %s32
      %p367 = scmp.eq.s32.totalorder %s366, 0
      %s369 = sadd.s32 %s368, 1
      %s370 = scalar_select %p367, %s368, %s369
      %p373 = pneg %p367
      %p374 = scmp.eq.s32.totalorder %s25, 1
      %p375 = por %p373, %p374
      %p376 = scmp.ne.s32.totalorder %s368, %s371
      %p377 = scmp.eq.s32.totalorder %s25, 0
      %p378 = por %p376, %p377
      %p379 = scmp.ne.s32.totalorder %s368, %s371
      %p380 = scmp.eq.s32.totalorder %s30, 1
      %p381 = por %p379, %p380
      %p382 = scmp.ne.s32.totalorder %s371, %s372
      %p383 = scmp.eq.s32.totalorder %s30, 0
      %p384 = por %p382, %p383
      %p385 = scmp.ne.s32.totalorder %s371, %s372
      %p386 = scmp.eq.s32.totalorder %s31, 1
      %p387 = por %p385, %p386
      %p389 = scmp.ne.s32.totalorder %s372, %s388
      %p390 = scmp.eq.s32.totalorder %s31, 0
      %p391 = por %p389, %p390
      %s392 = ssub.s32 %s25, %s32
      %p393 = scmp.eq.s32.totalorder %s392, 0
      %s395 = sadd.s32 %s394, 1
      %s396 = scalar_select %p393, %s394, %s395
      %p399 = pneg %p393
      %p400 = scmp.eq.s32.totalorder %s25, 1
      %p401 = por %p399, %p400
      %p402 = scmp.ne.s32.totalorder %s394, %s397
      %p403 = scmp.eq.s32.totalorder %s25, 0
      %p404 = por %p402, %p403
      %p405 = scmp.ne.s32.totalorder %s394, %s397
      %p406 = scmp.eq.s32.totalorder %s30, 1
      %p407 = por %p405, %p406
      %p408 = scmp.ne.s32.totalorder %s397, %s398
      %p409 = scmp.eq.s32.totalorder %s30, 0
      %p410 = por %p408, %p409
      %p411 = scmp.ne.s32.totalorder %s397, %s398
      %p412 = scmp.eq.s32.totalorder %s31, 1
      %p413 = por %p411, %p412
      %p415 = scmp.ne.s32.totalorder %s398, %s414
      %p416 = scmp.eq.s32.totalorder %s31, 0
      %p417 = por %p415, %p416
      %s419 = sadd.s32 %s418, 1
      %p422 = scmp.eq.s32.totalorder %s25, 1
      %p423 = scmp.ne.s32.totalorder %s418, %s420
      %p424 = scmp.eq.s32.totalorder %s25, 0
      %p425 = por %p423, %p424
      %p426 = scmp.ne.s32.totalorder %s418, %s420
      %p427 = scmp.eq.s32.totalorder %s30, 1
      %p428 = por %p426, %p427
      %p429 = scmp.ne.s32.totalorder %s420, %s421
      %p430 = scmp.eq.s32.totalorder %s30, 0
      %p431 = por %p429, %p430
      %p432 = scmp.ne.s32.totalorder %s420, %s421
      %p433 = scmp.eq.s32.totalorder %s31, 1
      %p434 = por %p432, %p433
      %p436 = scmp.ne.s32.totalorder %s421, %s435
      %p437 = scmp.eq.s32.totalorder %s31, 0
      %p438 = por %p436, %p437
      %s440 = sadd.s32 %s439, 1
      %p443 = scmp.eq.s32.totalorder %s25, 1
      %p444 = scmp.ne.s32.totalorder %s439, %s441
      %p445 = scmp.eq.s32.totalorder %s25, 0
      %p446 = por %p444, %p445
      %p447 = scmp.ne.s32.totalorder %s439, %s441
      %p448 = scmp.eq.s32.totalorder %s30, 1
      %p449 = por %p447, %p448
      %p450 = scmp.ne.s32.totalorder %s441, %s442
      %p451 = scmp.eq.s32.totalorder %s30, 0
      %p452 = por %p450, %p451
      %p453 = scmp.ne.s32.totalorder %s441, %s442
      %p454 = scmp.eq.s32.totalorder %s31, 1
      %p455 = por %p453, %p454
      %p457 = scmp.ne.s32.totalorder %s442, %s456
      %p458 = scmp.eq.s32.totalorder %s31, 0
      %p459 = por %p457, %p458
      %p460 = scmp.le.s32.totalorder 1, %s25
      %p461 = scmp.lt.s32.totalorder %s25, 3
      %p462 = pnand %p460, %p461
      %p463 = pneg %p462
      // Predicated region
      $region9: #{realnvp_forward.1} parent=5 // pred_check
        _
      $region10: #{realnvp_forward.1} parent=5 // pred_check_branch
        %465 = sbr.rel (%p462) target = $region12
      $region11: #{realnvp_forward.1} parent=5 // pred_region
        %s466 = ssub.s32 %s25, 1
        // Predicated region
        $region13: #{realnvp_forward.1} parent=11 // pred_check
          %p467 = pneg %p46
        $region14: #{realnvp_forward.1} parent=11 // pred_check_branch
          %469 = sbr.rel (%p467) target = $region16
        $region15: #{realnvp_forward.1} parent=11 // pred_region
          _
        $region16: #{realnvp_forward.1} parent=11 // pred_fallthru
          _
      $region12: #{realnvp_forward.1} parent=5 // pred_fallthru
        _
      %p470 = scmp.lt.s32.totalorder %s25, 2
      // Predicated region
      $region17: #{realnvp_forward.1} parent=5 // pred_check
        %p471 = pneg %p470
      $region18: #{realnvp_forward.1} parent=5 // pred_check_branch
        %473 = sbr.rel (%p471) target = $region20
      $region19: #{realnvp_forward.1} parent=5 // pred_region
        // Predicated region
        $region21: #{realnvp_forward.1} parent=19 // pred_check
          %p474 = pneg %p66
        $region22: #{realnvp_forward.1} parent=19 // pred_check_branch
          %476 = sbr.rel (%p474) target = $region24
        $region23: #{realnvp_forward.1} parent=19 // pred_region
          %p477 = scmp.lt.s32.totalorder %s25, 1
          %s478 = scalar_select %p477, %s25, 1
          %s479 = smul.addr %s478, 16
          %s480 = smul.addr %s479, 8
          %s481 = scalar_lea.vmem %s1, %s480
        $region24: #{realnvp_forward.1} parent=19 // pred_fallthru
          _
        // Predicated region
        $region25: #{realnvp_forward.1} parent=19 // pred_check
          %p482 = pneg %p92
        $region26: #{realnvp_forward.1} parent=19 // pred_check_branch
          %484 = sbr.rel (%p482) target = $region28
        $region27: #{realnvp_forward.1} parent=19 // pred_region
          %p485 = scmp.lt.s32.totalorder %s25, 1
          %s486 = scalar_select %p485, %s25, 1
          %s487 = scalar_lea.vmem %s2, %s486
        $region28: #{realnvp_forward.1} parent=19 // pred_fallthru
          _
        // Predicated region
        $region29: #{realnvp_forward.1} parent=19 // pred_check
          %p488 = pneg %p118
        $region30: #{realnvp_forward.1} parent=19 // pred_check_branch
          %490 = sbr.rel (%p488) target = $region32
        $region31: #{realnvp_forward.1} parent=19 // pred_region
          %p491 = scmp.lt.s32.totalorder %s25, 1
          %s492 = scalar_select %p491, %s25, 1
          %s493 = smul.addr %s492, 16
          %s494 = smul.addr %s493, 8
          %s495 = scalar_lea.vmem %s3, %s494
        $region32: #{realnvp_forward.1} parent=19 // pred_fallthru
          _
        // Predicated region
        $region33: #{realnvp_forward.1} parent=19 // pred_check
          %p496 = pneg %p144
        $region34: #{realnvp_forward.1} parent=19 // pred_check_branch
          %498 = sbr.rel (%p496) target = $region36
        $region35: #{realnvp_forward.1} parent=19 // pred_region
          %p499 = scmp.lt.s32.totalorder %s25, 1
          %s500 = scalar_select %p499, %s25, 1
          %s501 = scalar_lea.vmem %s4, %s500
        $region36: #{realnvp_forward.1} parent=19 // pred_fallthru
          _
        // Predicated region
        $region37: #{realnvp_forward.1} parent=19 // pred_check
          %p502 = pneg %p170
        $region38: #{realnvp_forward.1} parent=19 // pred_check_branch
          %504 = sbr.rel (%p502) target = $region40
        $region39: #{realnvp_forward.1} parent=19 // pred_region
          %p505 = scmp.lt.s32.totalorder %s25, 1
          %s506 = scalar_select %p505, %s25, 1
          %s507 = smul.addr %s506, 16
          %s508 = smul.addr %s507, 8
          %s509 = scalar_lea.vmem %s5, %s508
        $region40: #{realnvp_forward.1} parent=19 // pred_fallthru
          _
        // Predicated region
        $region41: #{realnvp_forward.1} parent=19 // pred_check
          %p510 = pneg %p196
        $region42: #{realnvp_forward.1} parent=19 // pred_check_branch
          %512 = sbr.rel (%p510) target = $region44
        $region43: #{realnvp_forward.1} parent=19 // pred_region
          %p513 = scmp.lt.s32.totalorder %s25, 1
          %s514 = scalar_select %p513, %s25, 1
          %s515 = scalar_lea.vmem %s6, %s514
        $region44: #{realnvp_forward.1} parent=19 // pred_fallthru
          _
        // Predicated region
        $region45: #{realnvp_forward.1} parent=19 // pred_check
          %p516 = pneg %p222
        $region46: #{realnvp_forward.1} parent=19 // pred_check_branch
          %518 = sbr.rel (%p516) target = $region48
        $region47: #{realnvp_forward.1} parent=19 // pred_region
          %p519 = scmp.lt.s32.totalorder %s25, 1
          %s520 = scalar_select %p519, %s25, 1
          %s521 = smul.addr %s520, 16
          %s522 = smul.addr %s521, 8
          %s523 = scalar_lea.vmem %s7, %s522
        $region48: #{realnvp_forward.1} parent=19 // pred_fallthru
          _
        // Predicated region
        $region49: #{realnvp_forward.1} parent=19 // pred_check
          %p524 = pneg %p248
        $region50: #{realnvp_forward.1} parent=19 // pred_check_branch
          %526 = sbr.rel (%p524) target = $region52
        $region51: #{realnvp_forward.1} parent=19 // pred_region
          %p527 = scmp.lt.s32.totalorder %s25, 1
          %s528 = scalar_select %p527, %s25, 1
          %s529 = scalar_lea.vmem %s8, %s528
        $region52: #{realnvp_forward.1} parent=19 // pred_fallthru
          _
        // Predicated region
        $region53: #{realnvp_forward.1} parent=19 // pred_check
          %p530 = pneg %p274
        $region54: #{realnvp_forward.1} parent=19 // pred_check_branch
          %532 = sbr.rel (%p530) target = $region56
        $region55: #{realnvp_forward.1} parent=19 // pred_region
          %p533 = scmp.lt.s32.totalorder %s25, 1
          %s534 = scalar_select %p533, %s25, 1
          %s535 = smul.addr %s534, 16
          %s536 = smul.addr %s535, 8
          %s537 = scalar_lea.vmem %s9, %s536
        $region56: #{realnvp_forward.1} parent=19 // pred_fallthru
          _
        // Predicated region
        $region57: #{realnvp_forward.1} parent=19 // pred_check
          %p538 = pneg %p300
        $region58: #{realnvp_forward.1} parent=19 // pred_check_branch
          %540 = sbr.rel (%p538) target = $region60
        $region59: #{realnvp_forward.1} parent=19 // pred_region
          %p541 = scmp.lt.s32.totalorder %s25, 1
          %s542 = scalar_select %p541, %s25, 1
          %s543 = scalar_lea.vmem %s10, %s542
        $region60: #{realnvp_forward.1} parent=19 // pred_fallthru
          _
        // Predicated region
        $region61: #{realnvp_forward.1} parent=19 // pred_check
          %p544 = pneg %p326
        $region62: #{realnvp_forward.1} parent=19 // pred_check_branch
          %546 = sbr.rel (%p544) target = $region64
        $region63: #{realnvp_forward.1} parent=19 // pred_region
          %p547 = scmp.lt.s32.totalorder %s25, 1
          %s548 = scalar_select %p547, %s25, 1
          %s549 = smul.addr %s548, 16
          %s550 = smul.addr %s549, 8
          %s551 = scalar_lea.vmem %s11, %s550
        $region64: #{realnvp_forward.1} parent=19 // pred_fallthru
          _
        // Predicated region
        $region65: #{realnvp_forward.1} parent=19 // pred_check
          %p552 = pneg %p352
        $region66: #{realnvp_forward.1} parent=19 // pred_check_branch
          %554 = sbr.rel (%p552) target = $region68
        $region67: #{realnvp_forward.1} parent=19 // pred_region
          %p555 = scmp.lt.s32.totalorder %s25, 1
          %s556 = scalar_select %p555, %s25, 1
          %s557 = scalar_lea.vmem %s12, %s556
        $region68: #{realnvp_forward.1} parent=19 // pred_fallthru
          _
        // Predicated region
        $region69: #{realnvp_forward.1} parent=19 // pred_check
          %p558 = pneg %p378
        $region70: #{realnvp_forward.1} parent=19 // pred_check_branch
          %560 = sbr.rel (%p558) target = $region72
        $region71: #{realnvp_forward.1} parent=19 // pred_region
          %p561 = scmp.lt.s32.totalorder %s25, 1
          %s562 = scalar_select %p561, %s25, 1
          %s563 = scalar_lea.vmem %s13, %s562
        $region72: #{realnvp_forward.1} parent=19 // pred_fallthru
          _
        // Predicated region
        $region73: #{realnvp_forward.1} parent=19 // pred_check
          %p564 = pneg %p404
        $region74: #{realnvp_forward.1} parent=19 // pred_check_branch
          %566 = sbr.rel (%p564) target = $region76
        $region75: #{realnvp_forward.1} parent=19 // pred_region
          %p567 = scmp.lt.s32.totalorder %s25, 1
          %s568 = scalar_select %p567, %s25, 1
          %s569 = scalar_lea.vmem %s14, %s568
        $region76: #{realnvp_forward.1} parent=19 // pred_fallthru
          _
      $region20: #{realnvp_forward.1} parent=5 // pred_fallthru
        _
      %p570 = scmp.le.s32.totalorder 1, %s25
      %p571 = scmp.lt.s32.totalorder %s25, 3
      %p572 = pnand %p570, %p571
      %p573 = pneg %p572
      // Predicated region
      $region77: #{realnvp_forward.1} parent=5 // pred_check
        _
      $region78: #{realnvp_forward.1} parent=5 // pred_check_branch
        %575 = sbr.rel (%p572) target = $region80
      $region79: #{realnvp_forward.1} parent=5 // pred_region
        %s576 = ssub.s32 %s25, 1
        %p577 = pneg %p46
        %p578 = pneg %p43
        %p579 = scmp.lt.s32.totalorder %s30, 1
        %s580 = scalar_select %p579, %s30, 1
        %s581 = smul.addr %s580, 16
        %s582 = smul.addr %s581, 8
        %s583 = scalar_lea.vmem %s1, %s582
        %p584 = pneg %p72
        %p585 = pneg %p69
        %p586 = scmp.lt.s32.totalorder %s30, 1
        %s587 = scalar_select %p586, %s30, 1
        %s588 = scalar_lea.vmem %s2, %s587
        %p589 = pneg %p98
        %p590 = pneg %p95
        %p591 = scmp.lt.s32.totalorder %s30, 1
        %s592 = scalar_select %p591, %s30, 1
        %s593 = smul.addr %s592, 16
        %s594 = smul.addr %s593, 8
        %s595 = scalar_lea.vmem %s3, %s594
        %p596 = pneg %p124
        %p597 = pneg %p121
        %p598 = scmp.lt.s32.totalorder %s30, 1
        %s599 = scalar_select %p598, %s30, 1
        %s600 = scalar_lea.vmem %s4, %s599
        %p601 = pneg %p150
        %p602 = pneg %p147
        %p603 = scmp.lt.s32.totalorder %s30, 1
        %s604 = scalar_select %p603, %s30, 1
        %s605 = smul.addr %s604, 16
        %s606 = smul.addr %s605, 8
        %s607 = scalar_lea.vmem %s5, %s606
        %p608 = pneg %p176
        %p609 = pneg %p173
        %p610 = scmp.lt.s32.totalorder %s30, 1
        %s611 = scalar_select %p610, %s30, 1
        %s612 = scalar_lea.vmem %s6, %s611
        %p613 = pneg %p202
        %p614 = pneg %p199
        %p615 = scmp.lt.s32.totalorder %s30, 1
        %s616 = scalar_select %p615, %s30, 1
        %s617 = smul.addr %s616, 16
        %s618 = smul.addr %s617, 8
        %s619 = scalar_lea.vmem %s7, %s618
        %p620 = pneg %p228
        %p621 = pneg %p225
        %p622 = scmp.lt.s32.totalorder %s30, 1
        %s623 = scalar_select %p622, %s30, 1
        %s624 = scalar_lea.vmem %s8, %s623
        %p625 = pneg %p254
        %p626 = pneg %p251
        %p627 = scmp.lt.s32.totalorder %s30, 1
        %s628 = scalar_select %p627, %s30, 1
        %s629 = smul.addr %s628, 16
        %s630 = smul.addr %s629, 8
        %s631 = scalar_lea.vmem %s9, %s630
        %p632 = pneg %p280
        %p633 = pneg %p277
        %p634 = scmp.lt.s32.totalorder %s30, 1
        %s635 = scalar_select %p634, %s30, 1
        %s636 = scalar_lea.vmem %s10, %s635
        %p637 = pneg %p306
        %p638 = pneg %p303
        %p639 = scmp.lt.s32.totalorder %s30, 1
        %s640 = scalar_select %p639, %s30, 1
        %s641 = smul.addr %s640, 16
        %s642 = smul.addr %s641, 8
        %s643 = scalar_lea.vmem %s11, %s642
        %p644 = pneg %p332
        %p645 = pneg %p329
        %p646 = scmp.lt.s32.totalorder %s30, 1
        %s647 = scalar_select %p646, %s30, 1
        %s648 = scalar_lea.vmem %s12, %s647
        %p649 = pneg %p358
        %p650 = pneg %p355
        %p651 = scmp.lt.s32.totalorder %s30, 1
        %s652 = scalar_select %p651, %s30, 1
        %s653 = scalar_lea.vmem %s13, %s652
        %p654 = pneg %p384
        %p655 = pneg %p381
        %p656 = scmp.lt.s32.totalorder %s30, 1
        %s657 = scalar_select %p656, %s30, 1
        %s658 = scalar_lea.vmem %s14, %s657
        %p659 = pneg %p410
        %p660 = pneg %p407
        %p661 = pneg %p431
        %p662 = pneg %p428
        %p663 = pneg %p452
        %p664 = pneg %p449
        %p665 = scmp.lt.s32.totalorder %s30, 1
        %s666 = scalar_select %p665, %s30, 1
        %s667 = smul.addr %s666, 16
        %s668 = smul.addr %s667, 8
        %s669 = scalar_lea.vmem %s1, %s668
        %p670 = scmp.lt.s32.totalorder %s30, 1
        %s671 = scalar_select %p670, %s30, 1
        %s672 = scalar_lea.vmem %s2, %s671
        %p673 = scmp.lt.s32.totalorder %s30, 1
        %s674 = scalar_select %p673, %s30, 1
        %s675 = smul.addr %s674, 16
        %s676 = smul.addr %s675, 8
        %s677 = scalar_lea.vmem %s3, %s676
        %p678 = scmp.lt.s32.totalorder %s30, 1
        %s679 = scalar_select %p678, %s30, 1
        %s680 = scalar_lea.vmem %s4, %s679
        %p681 = scmp.lt.s32.totalorder %s30, 1
        %s682 = scalar_select %p681, %s30, 1
        %s683 = smul.addr %s682, 16
        %s684 = smul.addr %s683, 8
        %s685 = scalar_lea.vmem %s5, %s684
        %p686 = scmp.lt.s32.totalorder %s30, 1
        %s687 = scalar_select %p686, %s30, 1
        %s688 = scalar_lea.vmem %s6, %s687
        %p689 = scmp.lt.s32.totalorder %s30, 1
        %s690 = scalar_select %p689, %s30, 1
        %s691 = smul.addr %s690, 16
        %s692 = smul.addr %s691, 8
        %s693 = scalar_lea.vmem %s7, %s692
        %p694 = scmp.lt.s32.totalorder %s30, 1
        %s695 = scalar_select %p694, %s30, 1
        %s696 = scalar_lea.vmem %s8, %s695
        %p697 = scmp.lt.s32.totalorder %s30, 1
        %s698 = scalar_select %p697, %s30, 1
        %s699 = smul.addr %s698, 16
        %s700 = smul.addr %s699, 8
        %s701 = scalar_lea.vmem %s9, %s700
        %p702 = scmp.lt.s32.totalorder %s30, 1
        %s703 = scalar_select %p702, %s30, 1
        %s704 = scalar_lea.vmem %s10, %s703
        %p705 = scmp.lt.s32.totalorder %s30, 1
        %s706 = scalar_select %p705, %s30, 1
        %s707 = smul.addr %s706, 16
        %s708 = smul.addr %s707, 8
        %s709 = scalar_lea.vmem %s11, %s708
        %p710 = scmp.lt.s32.totalorder %s30, 1
        %s711 = scalar_select %p710, %s30, 1
        %s712 = scalar_lea.vmem %s12, %s711
        %p713 = scmp.lt.s32.totalorder %s30, 1
        %s714 = scalar_select %p713, %s30, 1
        %s715 = scalar_lea.vmem %s13, %s714
        %p716 = scmp.lt.s32.totalorder %s30, 1
        %s717 = scalar_select %p716, %s30, 1
        %s718 = scalar_lea.vmem %s14, %s717
        %p719 = scmp.eq.s32.totalorder %s30, 0
        // Predicated region
        $region81: #{realnvp_forward.1} parent=79 // pred_check
          %p720 = pneg %p719
        $region82: #{realnvp_forward.1} parent=79 // pred_check_branch
          %722 = sbr.rel (%p720) target = $region84
        $region83: #{realnvp_forward.1} parent=79 // pred_region
          %v723 = vld [vmem:[%s0] sm:$0xff]
          %724 = vst [vmem:[#allocation2] sm:$0xff] %v723
          %725 = vst [vmem:[#allocation3] sm:$0xff] 0.0
        $region84: #{realnvp_forward.1} parent=79 // pred_fallthru
          _
        %v726 = vld [vmem:[#allocation2] sm:$0xff]
        %v727 = vlaneseq
        %v728 = vand.u32 %v727, 127
        %v729 = vstv %s30
        %v730 = vadd.s32 %v728, %v729
        %vm731 = vcmp.lt.s32.totalorder %v730, 0
        %v732 = vsub.s32 0, %v730
        %v733 = vsel %vm731, %v732, %v730
        %v734 = vshrl.u32 %v733, 1
        %v735 = vand.u32 %v733, 1
        %v736 = vsub.s32 0, %v735
        %v737 = vsel %vm731, %v736, %v735
        %vm738 = vcmp.ne.s32.totalorder %v737, 0
        %vm739 = vcmp.lt.s32.totalorder %v737, 0
        %vm740 = vmand %vm739, %vm738
        %v741 = vadd.s32 %v737, 2
        %v742 = vsel %vm740, %v741, %v737
        %v743 = vcvt.s32.f32 %v742
        %v744 = vsub.f32 1.0, %v743
        %v745 = vmul.f32 %v726, %v743
        %v746 = vld [vmem:[%s669] sm:$0xff]
        %v747 = vld [vmem:[%s669 + $0x8] sm:$0xff]
        %v748 = vld [vmem:[%s669 + $0x10] sm:$0xff]
        %v749 = vld [vmem:[%s669 + $0x18] sm:$0xff]
        %v750 = vld [vmem:[%s669 + $0x20] sm:$0xff]
        %v751 = vld [vmem:[%s669 + $0x28] sm:$0xff]
        %v752 = vld [vmem:[%s669 + $0x30] sm:$0xff]
        %v753 = vld [vmem:[%s669 + $0x38] sm:$0xff]
        %v754 = vld [vmem:[%s669 + $0x40] sm:$0xff]
        %v755 = vld [vmem:[%s669 + $0x48] sm:$0xff]
        %v756 = vld [vmem:[%s669 + $0x50] sm:$0xff]
        %v757 = vld [vmem:[%s669 + $0x58] sm:$0xff]
        %v758 = vld [vmem:[%s669 + $0x60] sm:$0xff]
        %v759 = vld [vmem:[%s669 + $0x68] sm:$0xff]
        %v760 = vld [vmem:[%s669 + $0x70] sm:$0xff]
        %v761 = vld [vmem:[%s669 + $0x78] sm:$0xff]
        %v762 = vld [vmem:[%s672] sm:$0x1]
        %v764 = vlaneseq
        %v765 = vshrl.u32 %v764, 7
        %v766 = vsub.s32 0, %v765
        %v767 = vrot.slane %v762, %v766
        %769 = vmatprep.subr.mxu0 0.0
        %770 = vmatpush1.msra.mxu0 %v761
        %771 = vmatprep.subr.mxu0 0.0
        %772 = vmatpush1.msra.mxu0 %v760
        %773 = vmatprep.subr.mxu0 0.0
        %774 = vmatpush1.msra.mxu0 %v759
        %775 = vmatprep.subr.mxu0 0.0
        %776 = vmatpush1.msra.mxu0 %v758
        %777 = vmatprep.subr.mxu0 0.0
        %778 = vmatpush1.msra.mxu0 %v757
        %779 = vmatprep.subr.mxu0 0.0
        %780 = vmatpush1.msra.mxu0 %v756
        %781 = vmatprep.subr.mxu0 0.0
        %782 = vmatpush1.msra.mxu0 %v755
        %783 = vmatprep.subr.mxu0 0.0
        %784 = vmatpush1.msra.mxu0 %v754
        %785 = vmatprep.subr.mxu0 0.0
        %786 = vmatpush1.msra.mxu0 %v753
        %787 = vmatprep.subr.mxu0 0.0
        %788 = vmatpush1.msra.mxu0 %v752
        %789 = vmatprep.subr.mxu0 0.0
        %790 = vmatpush1.msra.mxu0 %v751
        %791 = vmatprep.subr.mxu0 0.0
        %792 = vmatpush1.msra.mxu0 %v750
        %793 = vmatprep.subr.mxu0 0.0
        %794 = vmatpush1.msra.mxu0 %v749
        %795 = vmatprep.subr.mxu0 0.0
        %796 = vmatpush1.msra.mxu0 %v748
        %797 = vmatprep.subr.mxu0 0.0
        %798 = vmatpush1.msra.mxu0 %v747
        %799 = vmatprep.subr.mxu0 0.0
        %800 = vmatpush1.msra.mxu0 %v746
        %801 = vmatprep.subr.mxu0 0.0
        %802 = vmatpush2.msra.mxu0 0.0
        %803 = vmatprep.subr.mxu0 0.0
        %804 = vmatpush2.msra.mxu0 0.0
        %805 = vmatprep.subr.mxu0 0.0
        %806 = vmatpush2.msra.mxu0 0.0
        %807 = vmatprep.subr.mxu0 0.0
        %808 = vmatpush2.msra.mxu0 0.0
        %809 = vmatprep.subr.mxu0 0.0
        %810 = vmatpush2.msra.mxu0 0.0
        %811 = vmatprep.subr.mxu0 0.0
        %812 = vmatpush2.msra.mxu0 0.0
        %813 = vmatprep.subr.mxu0 0.0
        %814 = vmatpush2.msra.mxu0 0.0
        %815 = vmatprep.subr.mxu0 0.0
        %816 = vmatpush2.msra.mxu0 0.0
        %817 = vmatprep.subr.mxu0 0.0
        %818 = vmatpush2.msra.mxu0 0.0
        %819 = vmatprep.subr.mxu0 0.0
        %820 = vmatpush2.msra.mxu0 0.0
        %821 = vmatprep.subr.mxu0 0.0
        %822 = vmatpush2.msra.mxu0 0.0
        %823 = vmatprep.subr.mxu0 0.0
        %824 = vmatpush2.msra.mxu0 0.0
        %825 = vmatprep.subr.mxu0 0.0
        %826 = vmatpush2.msra.mxu0 0.0
        %827 = vmatprep.subr.mxu0 0.0
        %828 = vmatpush2.msra.mxu0 0.0
        %829 = vmatprep.subr.mxu0 0.0
        %830 = vmatpush2.msra.mxu0 0.0
        %831 = vmatprep.subr.mxu0 0.0
        %832 = vmatpush2.msra.mxu0 0.0
        %833 = vmatprep.mubr.f32.mxu0 0.0
        %834 = vmatmul.mubr.f32.gmra.mxu0 %v745
        %v835 = vpop.f32.mrf.mxu0
        %v836 = vadd.f32 %v767, %v835
        %v837 = vpop.f32.mrf.mxu0
        %838 = vdwg.mxu0
        %v839 = vtanh.pop %v836
        %v840 = vld [vmem:[%s677] sm:$0xff]
        %v841 = vld [vmem:[%s677 + $0x8] sm:$0xff]
        %v842 = vld [vmem:[%s677 + $0x10] sm:$0xff]
        %v843 = vld [vmem:[%s677 + $0x18] sm:$0xff]
        %v844 = vld [vmem:[%s677 + $0x20] sm:$0xff]
        %v845 = vld [vmem:[%s677 + $0x28] sm:$0xff]
        %v846 = vld [vmem:[%s677 + $0x30] sm:$0xff]
        %v847 = vld [vmem:[%s677 + $0x38] sm:$0xff]
        %v848 = vld [vmem:[%s677 + $0x40] sm:$0xff]
        %v849 = vld [vmem:[%s677 + $0x48] sm:$0xff]
        %v850 = vld [vmem:[%s677 + $0x50] sm:$0xff]
        %v851 = vld [vmem:[%s677 + $0x58] sm:$0xff]
        %v852 = vld [vmem:[%s677 + $0x60] sm:$0xff]
        %v853 = vld [vmem:[%s677 + $0x68] sm:$0xff]
        %v854 = vld [vmem:[%s677 + $0x70] sm:$0xff]
        %v855 = vld [vmem:[%s677 + $0x78] sm:$0xff]
        %v856 = vld [vmem:[%s680] sm:$0x1]
        %v858 = vlaneseq
        %v859 = vshrl.u32 %v858, 7
        %v860 = vsub.s32 0, %v859
        %v861 = vrot.slane %v856, %v860
        %863 = vmatprep.subr.mxu0 0.0
        %864 = vmatpush1.msra.mxu0 %v855
        %865 = vmatprep.subr.mxu0 0.0
        %866 = vmatpush1.msra.mxu0 %v854
        %867 = vmatprep.subr.mxu0 0.0
        %868 = vmatpush1.msra.mxu0 %v853
        %869 = vmatprep.subr.mxu0 0.0
        %870 = vmatpush1.msra.mxu0 %v852
        %871 = vmatprep.subr.mxu0 0.0
        %872 = vmatpush1.msra.mxu0 %v851
        %873 = vmatprep.subr.mxu0 0.0
        %874 = vmatpush1.msra.mxu0 %v850
        %875 = vmatprep.subr.mxu0 0.0
        %876 = vmatpush1.msra.mxu0 %v849
        %877 = vmatprep.subr.mxu0 0.0
        %878 = vmatpush1.msra.mxu0 %v848
        %879 = vmatprep.subr.mxu0 0.0
        %880 = vmatpush1.msra.mxu0 %v847
        %881 = vmatprep.subr.mxu0 0.0
        %882 = vmatpush1.msra.mxu0 %v846
        %883 = vmatprep.subr.mxu0 0.0
        %884 = vmatpush1.msra.mxu0 %v845
        %885 = vmatprep.subr.mxu0 0.0
        %886 = vmatpush1.msra.mxu0 %v844
        %887 = vmatprep.subr.mxu0 0.0
        %888 = vmatpush1.msra.mxu0 %v843
        %889 = vmatprep.subr.mxu0 0.0
        %890 = vmatpush1.msra.mxu0 %v842
        %891 = vmatprep.subr.mxu0 0.0
        %892 = vmatpush1.msra.mxu0 %v841
        %893 = vmatprep.subr.mxu0 0.0
        %894 = vmatpush1.msra.mxu0 %v840
        %895 = vmatprep.subr.mxu0 0.0
        %896 = vmatpush2.msra.mxu0 0.0
        %897 = vmatprep.subr.mxu0 0.0
        %898 = vmatpush2.msra.mxu0 0.0
        %899 = vmatprep.subr.mxu0 0.0
        %900 = vmatpush2.msra.mxu0 0.0
        %901 = vmatprep.subr.mxu0 0.0
        %902 = vmatpush2.msra.mxu0 0.0
        %903 = vmatprep.subr.mxu0 0.0
        %904 = vmatpush2.msra.mxu0 0.0
        %905 = vmatprep.subr.mxu0 0.0
        %906 = vmatpush2.msra.mxu0 0.0
        %907 = vmatprep.subr.mxu0 0.0
        %908 = vmatpush2.msra.mxu0 0.0
        %909 = vmatprep.subr.mxu0 0.0
        %910 = vmatpush2.msra.mxu0 0.0
        %911 = vmatprep.subr.mxu0 0.0
        %912 = vmatpush2.msra.mxu0 0.0
        %913 = vmatprep.subr.mxu0 0.0
        %914 = vmatpush2.msra.mxu0 0.0
        %915 = vmatprep.subr.mxu0 0.0
        %916 = vmatpush2.msra.mxu0 0.0
        %917 = vmatprep.subr.mxu0 0.0
        %918 = vmatpush2.msra.mxu0 0.0
        %919 = vmatprep.subr.mxu0 0.0
        %920 = vmatpush2.msra.mxu0 0.0
        %921 = vmatprep.subr.mxu0 0.0
        %922 = vmatpush2.msra.mxu0 0.0
        %923 = vmatprep.subr.mxu0 0.0
        %924 = vmatpush2.msra.mxu0 0.0
        %925 = vmatprep.subr.mxu0 0.0
        %926 = vmatpush2.msra.mxu0 0.0
        %927 = vmatprep.mubr.f32.mxu0 0.0
        %928 = vmatmul.mubr.f32.gmra.mxu0 %v839
        %v929 = vpop.f32.mrf.mxu0
        %v930 = vadd.f32 %v861, %v929
        %v931 = vpop.f32.mrf.mxu0
        %932 = vdwg.mxu0
        %v933 = vtanh.pop %v930
        %v934 = vld [vmem:[%s685] sm:$0xff]
        %v935 = vld [vmem:[%s685 + $0x8] sm:$0xff]
        %v936 = vld [vmem:[%s685 + $0x10] sm:$0xff]
        %v937 = vld [vmem:[%s685 + $0x18] sm:$0xff]
        %v938 = vld [vmem:[%s685 + $0x20] sm:$0xff]
        %v939 = vld [vmem:[%s685 + $0x28] sm:$0xff]
        %v940 = vld [vmem:[%s685 + $0x30] sm:$0xff]
        %v941 = vld [vmem:[%s685 + $0x38] sm:$0xff]
        %v942 = vld [vmem:[%s685 + $0x40] sm:$0xff]
        %v943 = vld [vmem:[%s685 + $0x48] sm:$0xff]
        %v944 = vld [vmem:[%s685 + $0x50] sm:$0xff]
        %v945 = vld [vmem:[%s685 + $0x58] sm:$0xff]
        %v946 = vld [vmem:[%s685 + $0x60] sm:$0xff]
        %v947 = vld [vmem:[%s685 + $0x68] sm:$0xff]
        %v948 = vld [vmem:[%s685 + $0x70] sm:$0xff]
        %v949 = vld [vmem:[%s685 + $0x78] sm:$0xff]
        %v950 = vld [vmem:[%s688] sm:$0x1]
        %v952 = vlaneseq
        %v953 = vshrl.u32 %v952, 7
        %v954 = vsub.s32 0, %v953
        %v955 = vrot.slane %v950, %v954
        %957 = vmatprep.subr.mxu0 0.0
        %958 = vmatpush1.msra.mxu0 %v949
        %959 = vmatprep.subr.mxu0 0.0
        %960 = vmatpush1.msra.mxu0 %v948
        %961 = vmatprep.subr.mxu0 0.0
        %962 = vmatpush1.msra.mxu0 %v947
        %963 = vmatprep.subr.mxu0 0.0
        %964 = vmatpush1.msra.mxu0 %v946
        %965 = vmatprep.subr.mxu0 0.0
        %966 = vmatpush1.msra.mxu0 %v945
        %967 = vmatprep.subr.mxu0 0.0
        %968 = vmatpush1.msra.mxu0 %v944
        %969 = vmatprep.subr.mxu0 0.0
        %970 = vmatpush1.msra.mxu0 %v943
        %971 = vmatprep.subr.mxu0 0.0
        %972 = vmatpush1.msra.mxu0 %v942
        %973 = vmatprep.subr.mxu0 0.0
        %974 = vmatpush1.msra.mxu0 %v941
        %975 = vmatprep.subr.mxu0 0.0
        %976 = vmatpush1.msra.mxu0 %v940
        %977 = vmatprep.subr.mxu0 0.0
        %978 = vmatpush1.msra.mxu0 %v939
        %979 = vmatprep.subr.mxu0 0.0
        %980 = vmatpush1.msra.mxu0 %v938
        %981 = vmatprep.subr.mxu0 0.0
        %982 = vmatpush1.msra.mxu0 %v937
        %983 = vmatprep.subr.mxu0 0.0
        %984 = vmatpush1.msra.mxu0 %v936
        %985 = vmatprep.subr.mxu0 0.0
        %986 = vmatpush1.msra.mxu0 %v935
        %987 = vmatprep.subr.mxu0 0.0
        %988 = vmatpush1.msra.mxu0 %v934
        %989 = vmatprep.subr.mxu0 0.0
        %990 = vmatpush2.msra.mxu0 0.0
        %991 = vmatprep.subr.mxu0 0.0
        %992 = vmatpush2.msra.mxu0 0.0
        %993 = vmatprep.subr.mxu0 0.0
        %994 = vmatpush2.msra.mxu0 0.0
        %995 = vmatprep.subr.mxu0 0.0
        %996 = vmatpush2.msra.mxu0 0.0
        %997 = vmatprep.subr.mxu0 0.0
        %998 = vmatpush2.msra.mxu0 0.0
        %999 = vmatprep.subr.mxu0 0.0
        %1000 = vmatpush2.msra.mxu0 0.0
        %1001 = vmatprep.subr.mxu0 0.0
        %1002 = vmatpush2.msra.mxu0 0.0
        %1003 = vmatprep.subr.mxu0 0.0
        %1004 = vmatpush2.msra.mxu0 0.0
        %1005 = vmatprep.subr.mxu0 0.0
        %1006 = vmatpush2.msra.mxu0 0.0
        %1007 = vmatprep.subr.mxu0 0.0
        %1008 = vmatpush2.msra.mxu0 0.0
        %1009 = vmatprep.subr.mxu0 0.0
        %1010 = vmatpush2.msra.mxu0 0.0
        %1011 = vmatprep.subr.mxu0 0.0
        %1012 = vmatpush2.msra.mxu0 0.0
        %1013 = vmatprep.subr.mxu0 0.0
        %1014 = vmatpush2.msra.mxu0 0.0
        %1015 = vmatprep.subr.mxu0 0.0
        %1016 = vmatpush2.msra.mxu0 0.0
        %1017 = vmatprep.subr.mxu0 0.0
        %1018 = vmatpush2.msra.mxu0 0.0
        %1019 = vmatprep.subr.mxu0 0.0
        %1020 = vmatpush2.msra.mxu0 0.0
        %1021 = vmatprep.mubr.f32.mxu0 0.0
        %1022 = vmatmul.mubr.f32.gmra.mxu0 %v933
        %v1023 = vpop.f32.mrf.mxu0
        %v1024 = vadd.f32 %v955, %v1023
        %v1025 = vpop.f32.mrf.mxu0
        %1026 = vdwg.mxu0
        %v1027 = vld [vmem:[%s693] sm:$0xff]
        %v1028 = vld [vmem:[%s693 + $0x8] sm:$0xff]
        %v1029 = vld [vmem:[%s693 + $0x10] sm:$0xff]
        %v1030 = vld [vmem:[%s693 + $0x18] sm:$0xff]
        %v1031 = vld [vmem:[%s693 + $0x20] sm:$0xff]
        %v1032 = vld [vmem:[%s693 + $0x28] sm:$0xff]
        %v1033 = vld [vmem:[%s693 + $0x30] sm:$0xff]
        %v1034 = vld [vmem:[%s693 + $0x38] sm:$0xff]
        %v1035 = vld [vmem:[%s693 + $0x40] sm:$0xff]
        %v1036 = vld [vmem:[%s693 + $0x48] sm:$0xff]
        %v1037 = vld [vmem:[%s693 + $0x50] sm:$0xff]
        %v1038 = vld [vmem:[%s693 + $0x58] sm:$0xff]
        %v1039 = vld [vmem:[%s693 + $0x60] sm:$0xff]
        %v1040 = vld [vmem:[%s693 + $0x68] sm:$0xff]
        %v1041 = vld [vmem:[%s693 + $0x70] sm:$0xff]
        %v1042 = vld [vmem:[%s693 + $0x78] sm:$0xff]
        %v1043 = vld [vmem:[%s696] sm:$0x1]
        %v1045 = vlaneseq
        %v1046 = vshrl.u32 %v1045, 7
        %v1047 = vsub.s32 0, %v1046
        %v1048 = vrot.slane %v1043, %v1047
        %1050 = vmatprep.subr.mxu0 0.0
        %1051 = vmatpush1.msra.mxu0 %v1042
        %1052 = vmatprep.subr.mxu0 0.0
        %1053 = vmatpush1.msra.mxu0 %v1041
        %1054 = vmatprep.subr.mxu0 0.0
        %1055 = vmatpush1.msra.mxu0 %v1040
        %1056 = vmatprep.subr.mxu0 0.0
        %1057 = vmatpush1.msra.mxu0 %v1039
        %1058 = vmatprep.subr.mxu0 0.0
        %1059 = vmatpush1.msra.mxu0 %v1038
        %1060 = vmatprep.subr.mxu0 0.0
        %1061 = vmatpush1.msra.mxu0 %v1037
        %1062 = vmatprep.subr.mxu0 0.0
        %1063 = vmatpush1.msra.mxu0 %v1036
        %1064 = vmatprep.subr.mxu0 0.0
        %1065 = vmatpush1.msra.mxu0 %v1035
        %1066 = vmatprep.subr.mxu0 0.0
        %1067 = vmatpush1.msra.mxu0 %v1034
        %1068 = vmatprep.subr.mxu0 0.0
        %1069 = vmatpush1.msra.mxu0 %v1033
        %1070 = vmatprep.subr.mxu0 0.0
        %1071 = vmatpush1.msra.mxu0 %v1032
        %1072 = vmatprep.subr.mxu0 0.0
        %1073 = vmatpush1.msra.mxu0 %v1031
        %1074 = vmatprep.subr.mxu0 0.0
        %1075 = vmatpush1.msra.mxu0 %v1030
        %1076 = vmatprep.subr.mxu0 0.0
        %1077 = vmatpush1.msra.mxu0 %v1029
        %1078 = vmatprep.subr.mxu0 0.0
        %1079 = vmatpush1.msra.mxu0 %v1028
        %1080 = vmatprep.subr.mxu0 0.0
        %1081 = vmatpush1.msra.mxu0 %v1027
        %1082 = vmatprep.subr.mxu0 0.0
        %1083 = vmatpush2.msra.mxu0 0.0
        %1084 = vmatprep.subr.mxu0 0.0
        %1085 = vmatpush2.msra.mxu0 0.0
        %1086 = vmatprep.subr.mxu0 0.0
        %1087 = vmatpush2.msra.mxu0 0.0
        %1088 = vmatprep.subr.mxu0 0.0
        %1089 = vmatpush2.msra.mxu0 0.0
        %1090 = vmatprep.subr.mxu0 0.0
        %1091 = vmatpush2.msra.mxu0 0.0
        %1092 = vmatprep.subr.mxu0 0.0
        %1093 = vmatpush2.msra.mxu0 0.0
        %1094 = vmatprep.subr.mxu0 0.0
        %1095 = vmatpush2.msra.mxu0 0.0
        %1096 = vmatprep.subr.mxu0 0.0
        %1097 = vmatpush2.msra.mxu0 0.0
        %1098 = vmatprep.subr.mxu0 0.0
        %1099 = vmatpush2.msra.mxu0 0.0
        %1100 = vmatprep.subr.mxu0 0.0
        %1101 = vmatpush2.msra.mxu0 0.0
        %1102 = vmatprep.subr.mxu0 0.0
        %1103 = vmatpush2.msra.mxu0 0.0
        %1104 = vmatprep.subr.mxu0 0.0
        %1105 = vmatpush2.msra.mxu0 0.0
        %1106 = vmatprep.subr.mxu0 0.0
        %1107 = vmatpush2.msra.mxu0 0.0
        %1108 = vmatprep.subr.mxu0 0.0
        %1109 = vmatpush2.msra.mxu0 0.0
        %1110 = vmatprep.subr.mxu0 0.0
        %1111 = vmatpush2.msra.mxu0 0.0
        %1112 = vmatprep.subr.mxu0 0.0
        %1113 = vmatpush2.msra.mxu0 0.0
        %1114 = vmatprep.mubr.f32.mxu0 0.0
        %1115 = vmatmul.mubr.f32.gmra.mxu0 %v745
        %v1116 = vpop.f32.mrf.mxu0
        %v1117 = vadd.f32 %v1048, %v1116
        %v1118 = vpop.f32.mrf.mxu0
        %1119 = vdwg.mxu0
        %v1120 = vmax.f32 %v1117, 0.0
        %v1121 = vld [vmem:[%s701] sm:$0xff]
        %v1122 = vld [vmem:[%s701 + $0x8] sm:$0xff]
        %v1123 = vld [vmem:[%s701 + $0x10] sm:$0xff]
        %v1124 = vld [vmem:[%s701 + $0x18] sm:$0xff]
        %v1125 = vld [vmem:[%s701 + $0x20] sm:$0xff]
        %v1126 = vld [vmem:[%s701 + $0x28] sm:$0xff]
        %v1127 = vld [vmem:[%s701 + $0x30] sm:$0xff]
        %v1128 = vld [vmem:[%s701 + $0x38] sm:$0xff]
        %v1129 = vld [vmem:[%s701 + $0x40] sm:$0xff]
        %v1130 = vld [vmem:[%s701 + $0x48] sm:$0xff]
        %v1131 = vld [vmem:[%s701 + $0x50] sm:$0xff]
        %v1132 = vld [vmem:[%s701 + $0x58] sm:$0xff]
        %v1133 = vld [vmem:[%s701 + $0x60] sm:$0xff]
        %v1134 = vld [vmem:[%s701 + $0x68] sm:$0xff]
        %v1135 = vld [vmem:[%s701 + $0x70] sm:$0xff]
        %v1136 = vld [vmem:[%s701 + $0x78] sm:$0xff]
        %v1137 = vld [vmem:[%s704] sm:$0x1]
        %v1139 = vlaneseq
        %v1140 = vshrl.u32 %v1139, 7
        %v1141 = vsub.s32 0, %v1140
        %v1142 = vrot.slane %v1137, %v1141
        %1144 = vmatprep.subr.mxu0 0.0
        %1145 = vmatpush1.msra.mxu0 %v1136
        %1146 = vmatprep.subr.mxu0 0.0
        %1147 = vmatpush1.msra.mxu0 %v1135
        %1148 = vmatprep.subr.mxu0 0.0
        %1149 = vmatpush1.msra.mxu0 %v1134
        %1150 = vmatprep.subr.mxu0 0.0
        %1151 = vmatpush1.msra.mxu0 %v1133
        %1152 = vmatprep.subr.mxu0 0.0
        %1153 = vmatpush1.msra.mxu0 %v1132
        %1154 = vmatprep.subr.mxu0 0.0
        %1155 = vmatpush1.msra.mxu0 %v1131
        %1156 = vmatprep.subr.mxu0 0.0
        %1157 = vmatpush1.msra.mxu0 %v1130
        %1158 = vmatprep.subr.mxu0 0.0
        %1159 = vmatpush1.msra.mxu0 %v1129
        %1160 = vmatprep.subr.mxu0 0.0
        %1161 = vmatpush1.msra.mxu0 %v1128
        %1162 = vmatprep.subr.mxu0 0.0
        %1163 = vmatpush1.msra.mxu0 %v1127
        %1164 = vmatprep.subr.mxu0 0.0
        %1165 = vmatpush1.msra.mxu0 %v1126
        %1166 = vmatprep.subr.mxu0 0.0
        %1167 = vmatpush1.msra.mxu0 %v1125
        %1168 = vmatprep.subr.mxu0 0.0
        %1169 = vmatpush1.msra.mxu0 %v1124
        %1170 = vmatprep.subr.mxu0 0.0
        %1171 = vmatpush1.msra.mxu0 %v1123
        %1172 = vmatprep.subr.mxu0 0.0
        %1173 = vmatpush1.msra.mxu0 %v1122
        %1174 = vmatprep.subr.mxu0 0.0
        %1175 = vmatpush1.msra.mxu0 %v1121
        %1176 = vmatprep.subr.mxu0 0.0
        %1177 = vmatpush2.msra.mxu0 0.0
        %1178 = vmatprep.subr.mxu0 0.0
        %1179 = vmatpush2.msra.mxu0 0.0
        %1180 = vmatprep.subr.mxu0 0.0
        %1181 = vmatpush2.msra.mxu0 0.0
        %1182 = vmatprep.subr.mxu0 0.0
        %1183 = vmatpush2.msra.mxu0 0.0
        %1184 = vmatprep.subr.mxu0 0.0
        %1185 = vmatpush2.msra.mxu0 0.0
        %1186 = vmatprep.subr.mxu0 0.0
        %1187 = vmatpush2.msra.mxu0 0.0
        %1188 = vmatprep.subr.mxu0 0.0
        %1189 = vmatpush2.msra.mxu0 0.0
        %1190 = vmatprep.subr.mxu0 0.0
        %1191 = vmatpush2.msra.mxu0 0.0
        %1192 = vmatprep.subr.mxu0 0.0
        %1193 = vmatpush2.msra.mxu0 0.0
        %1194 = vmatprep.subr.mxu0 0.0
        %1195 = vmatpush2.msra.mxu0 0.0
        %1196 = vmatprep.subr.mxu0 0.0
        %1197 = vmatpush2.msra.mxu0 0.0
        %1198 = vmatprep.subr.mxu0 0.0
        %1199 = vmatpush2.msra.mxu0 0.0
        %1200 = vmatprep.subr.mxu0 0.0
        %1201 = vmatpush2.msra.mxu0 0.0
        %1202 = vmatprep.subr.mxu0 0.0
        %1203 = vmatpush2.msra.mxu0 0.0
        %1204 = vmatprep.subr.mxu0 0.0
        %1205 = vmatpush2.msra.mxu0 0.0
        %1206 = vmatprep.subr.mxu0 0.0
        %1207 = vmatpush2.msra.mxu0 0.0
        %1208 = vmatprep.mubr.f32.mxu0 0.0
        %1209 = vmatmul.mubr.f32.gmra.mxu0 %v1120
        %v1210 = vpop.f32.mrf.mxu0
        %v1211 = vadd.f32 %v1142, %v1210
        %v1212 = vpop.f32.mrf.mxu0
        %1213 = vdwg.mxu0
        %v1214 = vmax.f32 %v1211, 0.0
        %v1215 = vld [vmem:[%s709] sm:$0xff]
        %v1216 = vld [vmem:[%s709 + $0x8] sm:$0xff]
        %v1217 = vld [vmem:[%s709 + $0x10] sm:$0xff]
        %v1218 = vld [vmem:[%s709 + $0x18] sm:$0xff]
        %v1219 = vld [vmem:[%s709 + $0x20] sm:$0xff]
        %v1220 = vld [vmem:[%s709 + $0x28] sm:$0xff]
        %v1221 = vld [vmem:[%s709 + $0x30] sm:$0xff]
        %v1222 = vld [vmem:[%s709 + $0x38] sm:$0xff]
        %v1223 = vld [vmem:[%s709 + $0x40] sm:$0xff]
        %v1224 = vld [vmem:[%s709 + $0x48] sm:$0xff]
        %v1225 = vld [vmem:[%s709 + $0x50] sm:$0xff]
        %v1226 = vld [vmem:[%s709 + $0x58] sm:$0xff]
        %v1227 = vld [vmem:[%s709 + $0x60] sm:$0xff]
        %v1228 = vld [vmem:[%s709 + $0x68] sm:$0xff]
        %v1229 = vld [vmem:[%s709 + $0x70] sm:$0xff]
        %v1230 = vld [vmem:[%s709 + $0x78] sm:$0xff]
        %v1231 = vld [vmem:[%s712] sm:$0x1]
        %v1233 = vlaneseq
        %v1234 = vshrl.u32 %v1233, 7
        %v1235 = vsub.s32 0, %v1234
        %v1236 = vrot.slane %v1231, %v1235
        %1238 = vmatprep.subr.mxu0 0.0
        %1239 = vmatpush1.msra.mxu0 %v1230
        %1240 = vmatprep.subr.mxu0 0.0
        %1241 = vmatpush1.msra.mxu0 %v1229
        %1242 = vmatprep.subr.mxu0 0.0
        %1243 = vmatpush1.msra.mxu0 %v1228
        %1244 = vmatprep.subr.mxu0 0.0
        %1245 = vmatpush1.msra.mxu0 %v1227
        %1246 = vmatprep.subr.mxu0 0.0
        %1247 = vmatpush1.msra.mxu0 %v1226
        %1248 = vmatprep.subr.mxu0 0.0
        %1249 = vmatpush1.msra.mxu0 %v1225
        %1250 = vmatprep.subr.mxu0 0.0
        %1251 = vmatpush1.msra.mxu0 %v1224
        %1252 = vmatprep.subr.mxu0 0.0
        %1253 = vmatpush1.msra.mxu0 %v1223
        %1254 = vmatprep.subr.mxu0 0.0
        %1255 = vmatpush1.msra.mxu0 %v1222
        %1256 = vmatprep.subr.mxu0 0.0
        %1257 = vmatpush1.msra.mxu0 %v1221
        %1258 = vmatprep.subr.mxu0 0.0
        %1259 = vmatpush1.msra.mxu0 %v1220
        %1260 = vmatprep.subr.mxu0 0.0
        %1261 = vmatpush1.msra.mxu0 %v1219
        %1262 = vmatprep.subr.mxu0 0.0
        %1263 = vmatpush1.msra.mxu0 %v1218
        %1264 = vmatprep.subr.mxu0 0.0
        %1265 = vmatpush1.msra.mxu0 %v1217
        %1266 = vmatprep.subr.mxu0 0.0
        %1267 = vmatpush1.msra.mxu0 %v1216
        %1268 = vmatprep.subr.mxu0 0.0
        %1269 = vmatpush1.msra.mxu0 %v1215
        %1270 = vmatprep.subr.mxu0 0.0
        %1271 = vmatpush2.msra.mxu0 0.0
        %1272 = vmatprep.subr.mxu0 0.0
        %1273 = vmatpush2.msra.mxu0 0.0
        %1274 = vmatprep.subr.mxu0 0.0
        %1275 = vmatpush2.msra.mxu0 0.0
        %1276 = vmatprep.subr.mxu0 0.0
        %1277 = vmatpush2.msra.mxu0 0.0
        %1278 = vmatprep.subr.mxu0 0.0
        %1279 = vmatpush2.msra.mxu0 0.0
        %1280 = vmatprep.subr.mxu0 0.0
        %1281 = vmatpush2.msra.mxu0 0.0
        %1282 = vmatprep.subr.mxu0 0.0
        %1283 = vmatpush2.msra.mxu0 0.0
        %1284 = vmatprep.subr.mxu0 0.0
        %1285 = vmatpush2.msra.mxu0 0.0
        %1286 = vmatprep.subr.mxu0 0.0
        %1287 = vmatpush2.msra.mxu0 0.0
        %1288 = vmatprep.subr.mxu0 0.0
        %1289 = vmatpush2.msra.mxu0 0.0
        %1290 = vmatprep.subr.mxu0 0.0
        %1291 = vmatpush2.msra.mxu0 0.0
        %1292 = vmatprep.subr.mxu0 0.0
        %1293 = vmatpush2.msra.mxu0 0.0
        %1294 = vmatprep.subr.mxu0 0.0
        %1295 = vmatpush2.msra.mxu0 0.0
        %1296 = vmatprep.subr.mxu0 0.0
        %1297 = vmatpush2.msra.mxu0 0.0
        %1298 = vmatprep.subr.mxu0 0.0
        %1299 = vmatpush2.msra.mxu0 0.0
        %1300 = vmatprep.subr.mxu0 0.0
        %1301 = vmatpush2.msra.mxu0 0.0
        %1302 = vmatprep.mubr.f32.mxu0 0.0
        %1303 = vmatmul.mubr.f32.gmra.mxu0 %v1214
        %v1304 = vpop.f32.mrf.mxu0
        %v1305 = vadd.f32 %v1236, %v1304
        %v1306 = vpop.f32.mrf.mxu0
        %1307 = vdwg.mxu0
        %v1308 = vsub.f32 %v726, %v1305
        %v1309 = vmul.f32 %v744, %v1308
        %v1310 = vsub.f32 0.0, %v1024
        %v1311 = vmul.f32 %v1310, 1.442695
        %v1312 = vpow.pop %v1311
        %v1313 = vmul.f32 %v1309, %v1312
        %v1314 = vadd.f32 %v745, %v1313
        %v1315 = vmul.f32 %v744, %v1024
        %v1316 = vsub.f32 0.0, %v1315
        %v1317 = vrot.slane %v1314, 4
        %v1318 = vadd.f32 %v1314, %v1317
        %v1319 = vrot.slane %v1318, 2
        %v1320 = vadd.f32 %v1318, %v1319
        %v1321 = vrot.slane %v1320, 1
        %v1322 = vadd.f32 %v1320, %v1321
        %v1323 = vrcp.pop 8.0
        %v1324 = vmul.f32 %v1322, %v1323
        %v1325 = vsub.f32 %v1314, %v1324
        %v1326 = vmul.f32 %v1325, %v1325
        %v1327 = vrot.slane %v1326, 4
        %v1328 = vadd.f32 %v1326, %v1327
        %v1329 = vrot.slane %v1328, 2
        %v1330 = vadd.f32 %v1328, %v1329
        %v1331 = vrot.slane %v1330, 1
        %v1332 = vadd.f32 %v1330, %v1331
        %v1333 = vmul.f32 %v1332, 0.14285715
        %v1334 = vadd.f32 %v1333, 1e-05
        %v1335 = vrsqrt.pop %v1334
        %v1336 = vmul.f32 %v1325, %v1335
        %v1337 = vld [vmem:[%s715] sm:$0x1]
        %v1338 = vmul.f32 %v1337, 1.442695
        %v1339 = vpow.pop %v1338
        %v1341 = vlaneseq
        %v1342 = vshrl.u32 %v1341, 7
        %v1343 = vsub.s32 0, %v1342
        %v1344 = vrot.slane %v1339, %v1343
        %v1346 = vmul.f32 %v1344, %v1336
        %v1347 = vld [vmem:[%s718] sm:$0x1]
        %v1349 = vlaneseq
        %v1350 = vshrl.u32 %v1349, 7
        %v1351 = vsub.s32 0, %v1350
        %v1352 = vrot.slane %v1347, %v1351
        %v1354 = vadd.f32 %v1346, %v1352
        %v1355 = vlog2.pop %v1335
        %v1356 = vmul.f32 %v1355, 0.6931472
        %v1357 = vadd.f32 %v1337, %v1356
        %1358 = vst [vmem:[#allocation2] sm:$0xff] %v1354
        %v1359 = vld [vmem:[#allocation3] sm:$0xff]
        %v1360 = vadd.f32 %v1359, %v1316
        %v1362 = vlaneseq
        %v1363 = vshrl.u32 %v1362, 7
        %v1364 = vsub.s32 0, %v1363
        %v1365 = vrot.slane %v1357, %v1364
        %v1367 = vadd.f32 %v1360, %v1365
        %1368 = vst [vmem:[#allocation3] sm:$0xff] %v1367
        %p1369 = scmp.eq.s32.totalorder %s30, 1
        // Predicated region
        $region85: #{realnvp_forward.1} parent=79 // pred_check
          %p1370 = pneg %p1369
        $region86: #{realnvp_forward.1} parent=79 // pred_check_branch
          %1372 = sbr.rel (%p1370) target = $region88
        $region87: #{realnvp_forward.1} parent=79 // pred_region
          %v1373 = vld [vmem:[#allocation2] sm:$0xff]
          %1374 = vst [vmem:[#allocation4] sm:$0xff] %v1373
          %v1375 = vld [vmem:[#allocation3] sm:$0xff]
          %1376 = vst [vmem:[#allocation6] sm:$0xff] %v1375
        $region88: #{realnvp_forward.1} parent=79 // pred_fallthru
          _
        // Predicated region
        $region89: #{realnvp_forward.1} parent=79 // pred_check
          %p1377 = pneg %p428
        $region90: #{realnvp_forward.1} parent=79 // pred_check_branch
          %1379 = sbr.rel (%p1377) target = $region92
        $region91: #{realnvp_forward.1} parent=79 // pred_region
          %s1381 = ssub.s32 128, 128
          %1382 = vsyncadd [#allocation5], %s1381
          %s1384 = sshll.u32 [#allocation4], 4
          %s1385 = int_to_ptr.vmem [resolvable:$true] %s1384
          %1387 = dma.vmem_to_hbm [thread:$0]  %s1385, 128, %s15, [#allocation5]
        $region92: #{realnvp_forward.1} parent=79 // pred_fallthru
          _
        // Predicated region
        $region93: #{realnvp_forward.1} parent=79 // pred_check
          %p1388 = pneg %p449
        $region94: #{realnvp_forward.1} parent=79 // pred_check_branch
          %1390 = sbr.rel (%p1388) target = $region96
        $region95: #{realnvp_forward.1} parent=79 // pred_region
          %s1392 = ssub.s32 128, 128
          %1393 = vsyncadd [#allocation7], %s1392
          %s1395 = sshll.u32 [#allocation6], 4
          %s1396 = int_to_ptr.vmem [resolvable:$true] %s1395
          %1398 = dma.vmem_to_hbm [thread:$0]  %s1396, 128, %s16, [#allocation7]
        $region96: #{realnvp_forward.1} parent=79 // pred_fallthru
          _
        // Predicated region
        $region97: #{realnvp_forward.1} parent=79 // pred_check
          %p1399 = pneg %p428
        $region98: #{realnvp_forward.1} parent=79 // pred_check_branch
          %1401 = sbr.rel (%p1399) target = $region100
        $region99: #{realnvp_forward.1} parent=79 // pred_region
          %1402 = dma.done [#allocation5], 128
        $region100: #{realnvp_forward.1} parent=79 // pred_fallthru
          _
        // Predicated region
        $region101: #{realnvp_forward.1} parent=79 // pred_check
          %p1403 = pneg %p449
        $region102: #{realnvp_forward.1} parent=79 // pred_check_branch
          %1405 = sbr.rel (%p1403) target = $region104
        $region103: #{realnvp_forward.1} parent=79 // pred_region
          %1406 = dma.done [#allocation7], 128
        $region104: #{realnvp_forward.1} parent=79 // pred_fallthru
          _
      $region80: #{realnvp_forward.1} parent=5 // pred_fallthru
        _
      %p1407 = scmp.le.s32.totalorder 2, %s25
      // Predicated region
      $region105: #{realnvp_forward.1} parent=5 // pred_check
        %p1408 = pneg %p1407
      $region106: #{realnvp_forward.1} parent=5 // pred_check_branch
        %1410 = sbr.rel (%p1408) target = $region108
      $region107: #{realnvp_forward.1} parent=5 // pred_region
        %s1411 = ssub.s32 %s25, 2
      $region108: #{realnvp_forward.1} parent=5 // pred_fallthru
        _
    $region6: #{realnvp_forward.1} parent=1 // loop_footer
      %s29 = sadd.s32 1, %s25
    $region7: #{realnvp_forward.1} parent=1 // loop_footer_branch
      %24 = sbr.rel target = $region3
    $region8: #{realnvp_forward.1} parent=1 // loop_exit
      _
    %1412 = vsyncpa [#allocation5], 1
    %s1413 = scalar_lea.sflag [#allocation5], 1
    %1414 = vsyncpa %s1413, 1
    %1415 = vsyncpa [#allocation7], 1

</llo_original>
